<compile_context>
chip_gen: v6e
topology: v6e:2x2x1
jax: 0.10.0
libtpu: 0.0.40
codegen_flags: <defaults>
</compile_context>

<pallas_src>
import functools

import jax
import jax.numpy as jnp
from jax import lax
from jax.experimental import pallas as pl
from jax.experimental.pallas import tpu as pltpu


def _round_up(x, m):
    return (x + m - 1) // m * m


# ----------------------------------------------------------------------------
# Pallas kernel: one (batch, P-tile) output block, accumulated over K-tiles.
# ----------------------------------------------------------------------------
def _lora_conv_kernel(patch_ref, wa_ref, bias_ref, scale_ref, bmat_ref,
                      out_ref, acc_ref, *, a_blk):
    # patch_ref : (1, TP, TK)      bf16 im2col patch tile
    # wa_ref    : (TK, N)          bf16 fused weight: W in [:, :Cout],
    #                              A in the last `rank` columns
    # bias_ref  : (1, 1, N)        f32 per-batch bias (W_b + s*shift@Bmat),
    #                              zero beyond Cout
    # scale_ref : (1, 1, a_blk)    f32 FiLM scale at the last `rank` lanes,
    #                              zero elsewhere
    # bmat_ref  : (a_blk, N)       bf16 lora_scale*B in the last `rank` rows /
    #                              first Cout columns, zero elsewhere
    # out_ref   : (1, TP, N)       bf16 output tile (cols >= Cout are garbage,
    #                              sliced off by the wrapper)
    # acc_ref   : (TP, N)          f32 scratch accumulator
    k = pl.program_id(2)

    @pl.when(k == 0)
    def _():
        acc_ref[...] = jnp.zeros_like(acc_ref)

    # Fused W|A matmul for this K slice (MXU, bf16 operands, f32 accumulate).
    acc_ref[...] += jnp.dot(patch_ref[0], wa_ref[...],
                            preferred_element_type=jnp.float32)

    @pl.when(k == pl.num_programs(2) - 1)
    def _():
        acc = acc_ref[...]                               # (TP, N) f32
        n = acc.shape[-1]
        # 128-aligned slice containing the packed LoRA-A columns.
        a_slab = acc[:, n - a_blk:]                      # (TP, a_blk)
        # FiLM scale (shift is folded into bias); zero lanes kill any W
        # columns that share this 128-lane block with A.
        a_cond = (scale_ref[0] * a_slab).astype(bmat_ref.dtype)
        b_out = jnp.dot(a_cond, bmat_ref[...],
                        preferred_element_type=jnp.float32)   # (TP, N)
        out_ref[0] = (acc + bias_ref[0] + b_out).astype(out_ref.dtype)


# ----------------------------------------------------------------------------
# im2col (glue, plain JAX): NCHW -> (B, Ho*Wo, Cin*kh*kw), tap order (c, i, j)
# to match PyTorch's OIHW weight flattening.  Runs in the compute dtype.
# ----------------------------------------------------------------------------
def _im2col(x, kh, kw, stride, padding):
    B, C, H, W = x.shape
    Ho = (H + 2 * padding - kh) // stride + 1
    Wo = (W + 2 * padding - kw) // stride + 1
    xp = jnp.pad(x, ((0, 0), (0, 0), (padding, padding), (padding, padding)))
    taps = []
    for i in range(kh):
        for j in range(kw):
            sl = xp[:, :, i:i + stride * Ho:stride, j:j + stride * Wo:stride]
            taps.append(sl)                                   # (B, C, Ho, Wo)
    pat = jnp.stack(taps, axis=2)                             # (B, C, kh*kw, Ho, Wo)
    pat = pat.reshape(B, C * kh * kw, Ho * Wo)
    pat = jnp.transpose(pat, (0, 2, 1))                       # (B, P, K)
    return pat, Ho, Wo


# ----------------------------------------------------------------------------
# Wrapper: full LoRAConv forward.
# ----------------------------------------------------------------------------
def lora_conv_forward(x, c, params, *, kernel_size, stride, padding, lora_scale,
                      tile_p=1024, tile_k=1024,
                      compute_dtype=jnp.bfloat16, out_dtype=jnp.bfloat16):
    # bf16 sublane packing is 16, lanes are 128.
    assert tile_p % 16 == 0 and tile_k % 128 == 0
    B, Cin, H, W = x.shape
    kh = kw = kernel_size
    Cout = params["W_w"].shape[0]
    rank = params["A_w"].shape[0]

    # Cast BEFORE im2col so the kh*kw-amplified patch slab is bf16 in HBM.
    patches, Ho, Wo = _im2col(x.astype(compute_dtype), kh, kw, stride, padding)
    P = Ho * Wo
    K = Cin * kh * kw

    # --- tiling / lane-dense padding ----------------------------------------
    # Fused weight width: W columns [0, Cout), A columns [N-rank, N).
    # (v6e/v7x note: TK defaults already a multiple of 256; rounding N beyond
    # 128 would only add memory, not MXU passes.)
    N = _round_up(Cout + rank, 128)
    a_blk = min(N, _round_up(rank, 128))      # 128-aligned block holding A
    TK = min(tile_k, _round_up(K, 128))       # K tile (multiple of 128)
    TP = min(tile_p, _round_up(P, 16))        # P tile (multiple of 16)
    K_p = _round_up(K, TK)
    P_p = _round_up(P, TP)

    # Patches: pad (already bf16).
    pat_p = jnp.pad(patches, ((0, 0), (0, P_p - P), (0, K_p - K)))

    # Fused [W | A-in-padding] weight (OIHW -> K x N, im2col tap order).
    f32 = jnp.float32
    w_kc = params["W_w"].reshape(Cout, K).T                   # (K, Cout)
    a_kc = params["A_w"].reshape(rank, K).T                   # (K, rank)
    b_mat = params["B_w"].reshape(Cout, rank).T               # (rank, Cout)
    wa = jnp.zeros((K_p, N), f32)
    wa = wa.at[:K, :Cout].set(w_kc)
    wa = wa.at[:K, N - rank:].set(a_kc)
    wa = wa.astype(compute_dtype)

    # LoRA-B block for the epilogue matmul (lora_scale folded, bf16 operands).
    bmat_blk = jnp.zeros((a_blk, N), f32)
    bmat_blk = bmat_blk.at[a_blk - rank:, :Cout].set(lora_scale * b_mat)
    bmat_blk = bmat_blk.astype(compute_dtype)

    # FiLM conditioning (tiny linears; plain JAX).  Shift is folded into a
    # per-batch bias: exact because the LoRA-B conv is a bias-free 1x1 conv.
    scale = c @ params["G_w"].T + 1.0                         # (B, rank)
    shift = c @ params["Bt_w"].T                              # (B, rank)
    bias = params["W_b"][None, :] + lora_scale * (shift @ b_mat)   # (B, Cout)
    bias_p = jnp.zeros((B, N), f32).at[:, :Cout].set(bias)[:, None, :]
    scale_p = jnp.zeros((B, a_blk), f32).at[:, a_blk - rank:].set(scale)
    scale_p = scale_p[:, None, :]                             # (B, 1, a_blk)

    # VMEM limit from the actual double-buffered tile bytes (not hard-coded).
    cds = jnp.dtype(compute_dtype).itemsize
    ods = jnp.dtype(out_dtype).itemsize
    vmem_bytes = (2 * TP * TK * cds            # patch tile, double-buffered
                  + 2 * TK * N * cds           # fused weight tile
                  + 2 * TP * N * ods           # output tile
                  + TP * N * 4                 # f32 accumulator scratch
                  + 2 * (N * 4 + a_blk * 4 + a_blk * N * cds))  # bias/scale/B
    vmem_limit = min(max(int(vmem_bytes * 1.4) + (2 << 20), 32 << 20), 48 << 20)

    kernel = functools.partial(_lora_conv_kernel, a_blk=a_blk)
    grid = (B, P_p // TP, K_p // TK)

    out_flat = pl.pallas_call(
        kernel,
        out_shape=jax.ShapeDtypeStruct((B, P_p, N), out_dtype),
        grid_spec=pltpu.PrefetchScalarGridSpec(
            num_scalar_prefetch=0,
            grid=grid,
            in_specs=[
                pl.BlockSpec((1, TP, TK), lambda b, p, k: (b, p, k)),
                pl.BlockSpec((TK, N), lambda b, p, k: (k, 0)),
                pl.BlockSpec((1, 1, N), lambda b, p, k: (b, 0, 0)),
                pl.BlockSpec((1, 1, a_blk), lambda b, p, k: (b, 0, 0)),
                pl.BlockSpec((a_blk, N), lambda b, p, k: (0, 0)),
            ],
            out_specs=pl.BlockSpec((1, TP, N), lambda b, p, k: (b, p, 0)),
            scratch_shapes=[pltpu.VMEM((TP, N), jnp.float32)],
        ),
        compiler_params=pltpu.CompilerParams(
            # B / P-tile axes shard across v7x's two TensorCores; K reduces.
            dimension_semantics=("parallel", "parallel", "arbitrary"),
            vmem_limit_bytes=vmem_limit,
        ),
    )(pat_p, wa, bias_p, scale_p, bmat_blk)

    # Invariant: columns >= Cout of the kernel output contain LoRA-A garbage
    # and MUST be sliced off here.
    out = out_flat[:, :P, :Cout].reshape(B, Ho, Wo, Cout)
    return out.transpose(0, 3, 1, 2)                          # NCHW (spec)


# ----------------------------------------------------------------------------
# Pure-JAX reference (lax.conv).  Operands of the convs are quantized to the
# kernel's compute dtype so both paths see matching bf16 operand values; only
# summation order / association of the FiLM shift differ.
# ----------------------------------------------------------------------------
def lora_conv_reference(x, c, params, *, stride, padding, lora_scale,
                        compute_dtype=jnp.bfloat16):
    f32 = jnp.float32
    q = lambda a: a.astype(compute_dtype).astype(f32)
    xq, wq, aq = q(x), q(params["W_w"]), q(params["A_w"])
    bq = q(lora_scale * params["B_w"])          # kernel folds lora_scale into B
    dn = ("NCHW", "OIHW", "NCHW")
    pad = [(padding, padding), (padding, padding)]
    w_out = lax.conv_general_dilated(xq, wq, (stride, stride), pad,
                                     dimension_numbers=dn)
    w_out = w_out + params["W_b"][None, :, None, None]
    a_out = lax.conv_general_dilated(xq, aq, (stride, stride), pad,
                                     dimension_numbers=dn)
    scale = c @ params["G_w"].T + 1.0
    shift = c @ params["Bt_w"].T
    a_cond = q(scale[:, :, None, None] * a_out + shift[:, :, None, None])
    b_out = lax.conv_general_dilated(a_cond, bq, (1, 1), [(0, 0), (0, 0)],
                                     dimension_numbers=dn)
    return w_out + b_out


if __name__ == "__main__":
    # Small, module-consistent shapes.
    B, Cin, H, W = 2, 4, 16, 16
    Cout, rank, c_dim = 8, 4, 32
    kernel_size, stride, padding = 3, 1, 1
    lora_scale = 1.0

    key = jax.random.PRNGKey(0)
    ks = jax.random.split(key, 8)

    # Deterministic synthetic parameters (shapes follow the PyTorch __init__).
    # NOTE: nn.init.zeros_(B.weight) would make the LoRA branch a no-op, so we
    # use small random values instead to actually exercise the fused path.
    params = {
        "W_w": jax.random.normal(ks[0], (Cout, Cin, kernel_size, kernel_size),
                                 jnp.float32) * 0.1,
        "W_b": jax.random.normal(ks[1], (Cout,), jnp.float32) * 0.1,
        "A_w": jax.random.normal(ks[2], (rank, Cin, kernel_size, kernel_size),
                                 jnp.float32) * (1.0 / (Cin * kernel_size ** 2)) ** 0.5,
        "B_w": jax.random.normal(ks[3], (Cout, rank, 1, 1), jnp.float32) * 0.1,
        "G_w": jax.random.normal(ks[4], (rank, c_dim), jnp.float32) * 0.05,
        "Bt_w": jax.random.normal(ks[5], (rank, c_dim), jnp.float32) * 0.05,
    }

    x = jax.random.normal(ks[6], (B, Cin, H, W), jnp.float32)
    c = jax.random.normal(ks[7], (B, c_dim), jnp.float32)   # data_provider.get_batch()

    out = lora_conv_forward(x, c, params, kernel_size=kernel_size,
                            stride=stride, padding=padding,
                            lora_scale=lora_scale)
    out = jax.block_until_ready(out)

    ref = lora_conv_reference(x, c, params, stride=stride, padding=padding,
                              lora_scale=lora_scale)
    assert out.shape == ref.shape == (B, Cout, H, W)
    # bf16 operands in both paths; remaining mismatch is f32 summation order,
    # the association of the (exact-in-real-arithmetic) shift folding, and the
    # bf16 output cast -> 5e-3 abs/rel is comfortably loose for O(1) outputs.
    err = jnp.max(jnp.abs(out.astype(jnp.float32) - ref))
    assert jnp.allclose(out.astype(jnp.float32), ref, atol=5e-3, rtol=5e-3), float(err)

    print("KERNEL_OK")
</pallas_src>

<mosaic_0001>
module attributes {stable_mosaic.version = 11 : i64} {
  func.func @_lora_conv_kernel(%arg0: i32, %arg1: i32, %arg2: i32, %arg3: memref<1x256x128xbf16, #tpu.memory_space<vmem>>, %arg4: memref<128x128xbf16, #tpu.memory_space<vmem>>, %arg5: memref<1x1x128xf32, #tpu.memory_space<vmem>>, %arg6: memref<1x1x128xf32, #tpu.memory_space<vmem>>, %arg7: memref<128x128xbf16, #tpu.memory_space<vmem>>, %arg8: memref<1x256x128xbf16, #tpu.memory_space<vmem>>, %arg9: memref<256x128xf32, #tpu.memory_space<vmem>>) attributes {dimension_semantics = [#tpu.dimension_semantics<parallel>, #tpu.dimension_semantics<parallel>, #tpu.dimension_semantics<arbitrary>], iteration_bounds = array<i64: 2, 1, 1>, scalar_prefetch = 0 : i64, scratch_operands = 1 : i64, tpu.core_type = #tpu.core_type<tc>, window_params = [{transform_indices = @transform_0, window_bounds = array<i64: 1, 256, 128>}, {transform_indices = @transform_1, window_bounds = array<i64: 128, 128>}, {transform_indices = @transform_2, window_bounds = array<i64: 1, 1, 128>}, {transform_indices = @transform_3, window_bounds = array<i64: 1, 1, 128>}, {pipeline_mode = #tpu.pipeline_mode<synchronous>, transform_indices = @transform_4, window_bounds = array<i64: 128, 128>}, {transform_indices = @transform_5, window_bounds = array<i64: 1, 256, 128>}]} {
    %c0_i32 = arith.constant 0 : i32
    %0 = arith.cmpi eq, %arg2, %c0_i32 : i32
    %1 = arith.extui %0 : i1 to i32
    %c0_i32_0 = arith.constant 0 : i32
    %2 = arith.cmpi ne, %1, %c0_i32_0 : i32
    scf.if %2 {
      %cst_11 = arith.constant 0.000000e+00 : f32
      %13 = vector.broadcast %cst_11 : f32 to vector<256x128xf32>
      %c0_12 = arith.constant 0 : index
      %c0_13 = arith.constant 0 : index
      %14 = vector.load %arg9[%c0_12, %c0_13] : memref<256x128xf32, #tpu.memory_space<vmem>>, vector<256x128xf32>
      tpu.vector_store %arg9[%c0_12, %c0_13], %13 {strides = array<i32>} : memref<256x128xf32, #tpu.memory_space<vmem>>, vector<256x128xf32>,
    } else {
    }
    %c0 = arith.constant 0 : index
    %c0_1 = arith.constant 0 : index
    %3 = vector.load %arg9[%c0, %c0_1] : memref<256x128xf32, #tpu.memory_space<vmem>>, vector<256x128xf32>
    %c0_2 = arith.constant 0 : index
    %c0_3 = arith.constant 0 : index
    %c0_4 = arith.constant 0 : index
    %4 = vector.load %arg3[%c0_2, %c0_3, %c0_4] : memref<1x256x128xbf16, #tpu.memory_space<vmem>>, vector<1x256x128xbf16>
    %5 = vector.shape_cast %4 : vector<1x256x128xbf16> to vector<256x128xbf16>
    %c0_5 = arith.constant 0 : index
    %c0_6 = arith.constant 0 : index
    %6 = vector.load %arg4[%c0_5, %c0_6] : memref<128x128xbf16, #tpu.memory_space<vmem>>, vector<128x128xbf16>
    %cst = arith.constant dense<0.000000e+00> : vector<256x128xf32>
    %7 = tpu.matmul %5, %6, %cst {dimension_numbers = #tpu.dot_dimension_numbers<[1], [0], [0], [1], [0, 0, 1, 1], [], []>} : vector<256x128xbf16>, vector<128x128xbf16>, vector<256x128xf32> -> vector<256x128xf32>
    %8 = arith.addf %3, %7 : vector<256x128xf32>
    %c0_7 = arith.constant 0 : index
    %c0_8 = arith.constant 0 : index
    %9 = vector.load %arg9[%c0_7, %c0_8] : memref<256x128xf32, #tpu.memory_space<vmem>>, vector<256x128xf32>
    tpu.vector_store %arg9[%c0_7, %c0_8], %8 {strides = array<i32>} : memref<256x128xf32, #tpu.memory_space<vmem>>, vector<256x128xf32>,
    %c0_i32_9 = arith.constant 0 : i32
    %10 = arith.cmpi eq, %arg2, %c0_i32_9 : i32
    %11 = arith.extui %10 : i1 to i32
    %c0_i32_10 = arith.constant 0 : i32
    %12 = arith.cmpi ne, %11, %c0_i32_10 : i32
    scf.if %12 {
      %c0_11 = arith.constant 0 : index
      %c0_12 = arith.constant 0 : index
      %13 = vector.load %arg9[%c0_11, %c0_12] : memref<256x128xf32, #tpu.memory_space<vmem>>, vector<256x128xf32>
      %c0_13 = arith.constant 0 : index
      %c0_14 = arith.constant 0 : index
      %c0_15 = arith.constant 0 : index
      %14 = vector.load %arg6[%c0_13, %c0_14, %c0_15] : memref<1x1x128xf32, #tpu.memory_space<vmem>>, vector<1x1x128xf32>
      %15 = vector.shape_cast %14 : vector<1x1x128xf32> to vector<1x128xf32>
      %16 = vector.broadcast %15 : vector<1x128xf32> to vector<256x128xf32>
      %17 = arith.mulf %16, %13 : vector<256x128xf32>
      %18 = arith.truncf %17 : vector<256x128xf32> to vector<256x128xbf16>
      %c0_16 = arith.constant 0 : index
      %c0_17 = arith.constant 0 : index
      %19 = vector.load %arg7[%c0_16, %c0_17] : memref<128x128xbf16, #tpu.memory_space<vmem>>, vector<128x128xbf16>
      %cst_18 = arith.constant dense<0.000000e+00> : vector<256x128xf32>
      %20 = tpu.matmul %18, %19, %cst_18 {dimension_numbers = #tpu.dot_dimension_numbers<[1], [0], [0], [1], [0, 0, 1, 1], [], []>} : vector<256x128xbf16>, vector<128x128xbf16>, vector<256x128xf32> -> vector<256x128xf32>
      %c0_19 = arith.constant 0 : index
      %c0_20 = arith.constant 0 : index
      %c0_21 = arith.constant 0 : index
      %21 = vector.load %arg5[%c0_19, %c0_20, %c0_21] : memref<1x1x128xf32, #tpu.memory_space<vmem>>, vector<1x1x128xf32>
      %22 = vector.shape_cast %21 : vector<1x1x128xf32> to vector<1x128xf32>
      %23 = vector.broadcast %22 : vector<1x128xf32> to vector<256x128xf32>
      %24 = arith.addf %13, %23 : vector<256x128xf32>
      %25 = arith.addf %24, %20 : vector<256x128xf32>
      %26 = arith.truncf %25 : vector<256x128xf32> to vector<256x128xbf16>
      %c0_22 = arith.constant 0 : index
      %c0_23 = arith.constant 0 : index
      %c0_24 = arith.constant 0 : index
      %27 = vector.load %arg8[%c0_22, %c0_23, %c0_24] : memref<1x256x128xbf16, #tpu.memory_space<vmem>>, vector<1x256x128xbf16>
      %28 = vector.shape_cast %27 : vector<1x256x128xbf16> to vector<256x128xbf16>
      %29 = vector.shape_cast %26 : vector<256x128xbf16> to vector<1x256x128xbf16>
      tpu.vector_store %arg8[%c0_22, %c0_23, %c0_24], %29 {strides = array<i32>} : memref<1x256x128xbf16, #tpu.memory_space<vmem>>, vector<1x256x128xbf16>,
    } else {
    }
    return
  }
  func.func @transform_0(%arg0: i32, %arg1: i32, %arg2: i32) -> (i32, i32, i32) {
    %c0_i32 = arith.constant 0 : i32
    return %arg0, %arg1, %arg2 : i32, i32, i32
  }
  func.func @transform_1(%arg0: i32, %arg1: i32, %arg2: i32) -> (i32, i32) {
    %c0_i32 = arith.constant 0 : i32
    %c0_i32_0 = arith.constant 0 : i32
    return %arg2, %c0_i32 : i32, i32
  }
  func.func @transform_2(%arg0: i32, %arg1: i32, %arg2: i32) -> (i32, i32, i32) {
    %c0_i32 = arith.constant 0 : i32
    %c0_i32_0 = arith.constant 0 : i32
    %c0_i32_1 = arith.constant 0 : i32
    return %arg0, %c0_i32, %c0_i32_0 : i32, i32, i32
  }
  func.func @transform_3(%arg0: i32, %arg1: i32, %arg2: i32) -> (i32, i32, i32) {
    %c0_i32 = arith.constant 0 : i32
    %c0_i32_0 = arith.constant 0 : i32
    %c0_i32_1 = arith.constant 0 : i32
    return %arg0, %c0_i32, %c0_i32_0 : i32, i32, i32
  }
  func.func @transform_4(%arg0: i32, %arg1: i32, %arg2: i32) -> (i32, i32) {
    %c0_i32 = arith.constant 0 : i32
    %c0_i32_0 = arith.constant 0 : i32
    %c0_i32_1 = arith.constant 0 : i32
    return %c0_i32, %c0_i32_0 : i32, i32
  }
  func.func @transform_5(%arg0: i32, %arg1: i32, %arg2: i32) -> (i32, i32, i32) {
    %c0_i32 = arith.constant 0 : i32
    %c0_i32_0 = arith.constant 0 : i32
    return %arg0, %arg1, %c0_i32 : i32, i32, i32
  }
}

</mosaic_0001>

<llo_original>
// kernel: tpu_custom_call.1
$region0: #{tpu_custom_call.1}
  #allocation0 [shape = 'u32[]', space=smem, size = 0x4, offset = 0x4, fixed_abs, tag = 'smem constant byte address 0x4 - core index']
  #allocation1 [shape = 'u32[144,128]{1,0:T(1,128)}', space=vmem, size = 0x12000, scoped, tag = 'internal scratch']
  #allocation2 [shape = 'f32[256,128]{1,0:T(8,128)}', space=vmem, size = 0x20000, scoped, tag = 'scratch operand']
  %s0 = inlined_call_operand.hbm [shape: bf16[2,256,128], index: 0, kind: input, shape index: {}]
  %s1 = inlined_call_operand.hbm [shape: bf16[128,128], index: 1, kind: input, shape index: {}]
  %s2 = inlined_call_operand.vmem [shape: f32[2,1,128], index: 2, kind: input, shape index: {}]
  %s3 = inlined_call_operand.vmem [shape: f32[2,1,128], index: 3, kind: input, shape index: {}]
  %s4 = inlined_call_operand.hbm [shape: bf16[128,128], index: 4, kind: input, shape index: {}]
  %s5 = inlined_call_operand.hbm [shape: bf16[2,256,128], index: 5, kind: output, shape index: {}]
  %s6 = sld [smem:[#allocation0]]
  $region73: #{tpu_custom_call.1} parent=0
    _
  %s8 = ssub.s32 1, %s6
  %s9 = scalar_select 0, %s8, %s6
  $region1: #{tpu_custom_call.1} parent=0
    #allocation3 [shape = 'u8[131072]{0}', space=vmem, size = 0x20000, scoped, tag = 'input window, operand 0']
    #allocation4 [shape = 's32[2]{0}', space=sflag, size = 0x8, scoped, tag = 'scoped memory for tpu_custom_call.1']
    #allocation5 [shape = 's32[2]{0}', space=sflag, size = 0x8, scoped, tag = 'scoped memory for tpu_custom_call.1']
    #allocation6 [shape = 'u8[32768]{0}', space=vmem, size = 0x8000, scoped, tag = 'input window, operand 1, single buffered']
    #allocation7 [shape = 's32[1]{0}', space=sflag, size = 0x4, scoped, tag = 'scoped memory for tpu_custom_call.1']
    #allocation8 [shape = 'u8[32768]{0}', space=vmem, size = 0x8000, scoped, tag = 'input window, operand 4, single buffered']
    #allocation9 [shape = 'u8[131072]{0}', space=vmem, size = 0x20000, scoped, tag = 'output window, operand 0']
    %10 = vsyncpa [#allocation4], 0
    %s11 = scalar_lea.sflag [#allocation4], 1
    %12 = vsyncpa %s11, 0
    %13 = vsyncpa [#allocation7], 0
    %14 = vsyncpa [#allocation5], 0
    %s15 = scalar_lea.sflag [#allocation5], 1
    %16 = vsyncpa %s15, 0
    loop: start=0, step=1, limit=4
    $region2: #{tpu_custom_call.1} parent=1 // loop_pre_header
      _
    $region3: #{tpu_custom_call.1} parent=1 // loop_header
      %s18 = sphi 0, %s22
      %p19 = scmp.ge.s32.totalorder %s18, 4
      %s25 = sphi 0, %s44
      %s26 = sphi 0, %s40
      %s27 = sphi 0, %s36
      %s28 = sphi 0, %s25
      %s29 = sphi 0, %s26
      %s30 = sphi 0, %s27
      %s31 = sphi 0, %s28
      %s32 = sphi 0, %s29
      %s33 = sphi 0, %s30
      %s51 = sphi 0, %s53
      %s54 = sphi 0, %s51
      %s55 = sphi 0, %s54
      %s71 = sphi 0, %s55
      %s77 = sphi 0, %s79
      %s80 = sphi 0, %s77
      %s81 = sphi 0, %s80
      %s97 = sphi 0, %s81
      %s103 = sphi 0, %s105
      %s106 = sphi 0, %s103
      %s107 = sphi 0, %s106
      %s123 = sphi 0, %s107
      %s129 = sphi 0, %s131
      %s132 = sphi 0, %s129
      %s133 = sphi 0, %s132
      %s149 = sphi 0, %s133
      %s153 = sphi 0, %s153
      %s155 = sphi 0, %s153
      %s156 = sphi 0, %s155
      %s170 = sphi 0, %s156
      %s178 = sphi 0, %s180
      %s181 = sphi 0, %s178
      %s182 = sphi 0, %s181
      %s198 = sphi 0, %s182
    $region4: #{tpu_custom_call.1} parent=1 // loop_header_branch
      %21 = sbr.rel (%p19) target = $region8
    $region5: #{tpu_custom_call.1} parent=1 // loop_body
      %s23 = ssub.s32 %s18, 1
      %s24 = ssub.s32 %s18, 2
      %s34 = sadd.s32 1, %s27
      %p35 = scmp.ge.s32.totalorder %s34, 1
      %s36 = scalar_select %p35, 0, %s34
      %s37 = sadd.s32 1, %s26
      %s38 = scalar_select %p35, %s37, %s26
      %p39 = scmp.ge.s32.totalorder %s38, 1
      %s40 = scalar_select %p39, 0, %s38
      %s41 = sadd.s32 1, %s25
      %s42 = scalar_select %p39, %s41, %s25
      %p43 = scmp.ge.s32.totalorder %s42, 2
      %s44 = scalar_select %p43, 0, %s42
      %s45 = ssub.s32 %s25, %s44
      %s46 = ssub.s32 %s26, %s40
      %s47 = sor.u32 %s45, %s46
      %s48 = ssub.s32 %s27, %s36
      %s49 = sor.u32 %s47, %s48
      %p50 = scmp.eq.s32.totalorder %s49, 0
      %s52 = sadd.s32 %s51, 1
      %s53 = scalar_select %p50, %s51, %s52
      %p56 = pneg %p50
      %p57 = scmp.eq.s32.totalorder %s18, 1
      %p58 = por %p56, %p57
      %p59 = scmp.ne.s32.totalorder %s51, %s54
      %p60 = scmp.eq.s32.totalorder %s18, 0
      %p61 = por %p59, %p60
      %p62 = scmp.ne.s32.totalorder %s51, %s54
      %p63 = scmp.eq.s32.totalorder %s23, 1
      %p64 = por %p62, %p63
      %p65 = scmp.ne.s32.totalorder %s54, %s55
      %p66 = scmp.eq.s32.totalorder %s23, 0
      %p67 = por %p65, %p66
      %p68 = scmp.ne.s32.totalorder %s54, %s55
      %p69 = scmp.eq.s32.totalorder %s24, 1
      %p70 = por %p68, %p69
      %p72 = scmp.ne.s32.totalorder %s55, %s71
      %p73 = scmp.eq.s32.totalorder %s24, 0
      %p74 = por %p72, %p73
      %s75 = ssub.s32 %s27, %s36
      %p76 = scmp.eq.s32.totalorder %s75, 0
      %s78 = sadd.s32 %s77, 1
      %s79 = scalar_select %p76, %s77, %s78
      %p82 = pneg %p76
      %p83 = scmp.eq.s32.totalorder %s18, 1
      %p84 = por %p82, %p83
      %p85 = scmp.ne.s32.totalorder %s77, %s80
      %p86 = scmp.eq.s32.totalorder %s18, 0
      %p87 = por %p85, %p86
      %p88 = scmp.ne.s32.totalorder %s77, %s80
      %p89 = scmp.eq.s32.totalorder %s23, 1
      %p90 = por %p88, %p89
      %p91 = scmp.ne.s32.totalorder %s80, %s81
      %p92 = scmp.eq.s32.totalorder %s23, 0
      %p93 = por %p91, %p92
      %p94 = scmp.ne.s32.totalorder %s80, %s81
      %p95 = scmp.eq.s32.totalorder %s24, 1
      %p96 = por %p94, %p95
      %p98 = scmp.ne.s32.totalorder %s81, %s97
      %p99 = scmp.eq.s32.totalorder %s24, 0
      %p100 = por %p98, %p99
      %s101 = ssub.s32 %s25, %s44
      %p102 = scmp.eq.s32.totalorder %s101, 0
      %s104 = sadd.s32 %s103, 1
      %s105 = scalar_select %p102, %s103, %s104
      %p108 = pneg %p102
      %p109 = scmp.eq.s32.totalorder %s18, 1
      %p110 = por %p108, %p109
      %p111 = scmp.ne.s32.totalorder %s103, %s106
      %p112 = scmp.eq.s32.totalorder %s18, 0
      %p113 = por %p111, %p112
      %p114 = scmp.ne.s32.totalorder %s103, %s106
      %p115 = scmp.eq.s32.totalorder %s23, 1
      %p116 = por %p114, %p115
      %p117 = scmp.ne.s32.totalorder %s106, %s107
      %p118 = scmp.eq.s32.totalorder %s23, 0
      %p119 = por %p117, %p118
      %p120 = scmp.ne.s32.totalorder %s106, %s107
      %p121 = scmp.eq.s32.totalorder %s24, 1
      %p122 = por %p120, %p121
      %p124 = scmp.ne.s32.totalorder %s107, %s123
      %p125 = scmp.eq.s32.totalorder %s24, 0
      %p126 = por %p124, %p125
      %s127 = ssub.s32 %s25, %s44
      %p128 = scmp.eq.s32.totalorder %s127, 0
      %s130 = sadd.s32 %s129, 1
      %s131 = scalar_select %p128, %s129, %s130
      %p134 = pneg %p128
      %p135 = scmp.eq.s32.totalorder %s18, 1
      %p136 = por %p134, %p135
      %p137 = scmp.ne.s32.totalorder %s129, %s132
      %p138 = scmp.eq.s32.totalorder %s18, 0
      %p139 = por %p137, %p138
      %p140 = scmp.ne.s32.totalorder %s129, %s132
      %p141 = scmp.eq.s32.totalorder %s23, 1
      %p142 = por %p140, %p141
      %p143 = scmp.ne.s32.totalorder %s132, %s133
      %p144 = scmp.eq.s32.totalorder %s23, 0
      %p145 = por %p143, %p144
      %p146 = scmp.ne.s32.totalorder %s132, %s133
      %p147 = scmp.eq.s32.totalorder %s24, 1
      %p148 = por %p146, %p147
      %p150 = scmp.ne.s32.totalorder %s133, %s149
      %p151 = scmp.eq.s32.totalorder %s24, 0
      %p152 = por %p150, %p151
      %s154 = sadd.s32 %s153, 1
      %p157 = scmp.eq.s32.totalorder %s18, 1
      %p158 = scmp.ne.s32.totalorder %s153, %s155
      %p159 = scmp.eq.s32.totalorder %s18, 0
      %p160 = por %p158, %p159
      %p161 = scmp.ne.s32.totalorder %s153, %s155
      %p162 = scmp.eq.s32.totalorder %s23, 1
      %p163 = por %p161, %p162
      %p164 = scmp.ne.s32.totalorder %s155, %s156
      %p165 = scmp.eq.s32.totalorder %s23, 0
      %p166 = por %p164, %p165
      %p167 = scmp.ne.s32.totalorder %s155, %s156
      %p168 = scmp.eq.s32.totalorder %s24, 1
      %p169 = por %p167, %p168
      %p171 = scmp.ne.s32.totalorder %s156, %s170
      %p172 = scmp.eq.s32.totalorder %s24, 0
      %p173 = por %p171, %p172
      %s174 = ssub.s32 %s25, %s44
      %s175 = ssub.s32 %s26, %s40
      %s176 = sor.u32 %s174, %s175
      %p177 = scmp.eq.s32.totalorder %s176, 0
      %s179 = sadd.s32 %s178, 1
      %s180 = scalar_select %p177, %s178, %s179
      %p183 = pneg %p177
      %p184 = scmp.eq.s32.totalorder %s18, 1
      %p185 = por %p183, %p184
      %p186 = scmp.ne.s32.totalorder %s178, %s181
      %p187 = scmp.eq.s32.totalorder %s18, 0
      %p188 = por %p186, %p187
      %p189 = scmp.ne.s32.totalorder %s178, %s181
      %p190 = scmp.eq.s32.totalorder %s23, 1
      %p191 = por %p189, %p190
      %p192 = scmp.ne.s32.totalorder %s181, %s182
      %p193 = scmp.eq.s32.totalorder %s23, 0
      %p194 = por %p192, %p193
      %p195 = scmp.ne.s32.totalorder %s181, %s182
      %p196 = scmp.eq.s32.totalorder %s24, 1
      %p197 = por %p195, %p196
      %p199 = scmp.ne.s32.totalorder %s182, %s198
      %p200 = scmp.eq.s32.totalorder %s24, 0
      %p201 = por %p199, %p200
      %p202 = scmp.le.s32.totalorder 1, %s18
      %p203 = scmp.lt.s32.totalorder %s18, 3
      %p204 = pnand %p202, %p203
      %p205 = pneg %p204
      // Predicated region
      $region9: #{tpu_custom_call.1} parent=5 // pred_check
        _
      $region10: #{tpu_custom_call.1} parent=5 // pred_check_branch
        %207 = sbr.rel (%p204) target = $region12
      $region11: #{tpu_custom_call.1} parent=5 // pred_region
        %s208 = ssub.s32 %s18, 1
        // Predicated region
        $region13: #{tpu_custom_call.1} parent=11 // pred_check
          %p209 = pneg %p93
        $region14: #{tpu_custom_call.1} parent=11 // pred_check_branch
          %211 = sbr.rel (%p209) target = $region16
        $region15: #{tpu_custom_call.1} parent=11 // pred_region
          %s212 = smul.u32 16, %s30
          %s214 = ssub.s32 1024, 1024
          %215 = vsyncadd [#allocation7], %s214
          %s216 = smul.addr %s212, 64
          %s217 = scalar_lea.hbm %s1, %s216
          %s218 = sshll.u32 [#allocation6], 4
          %s219 = int_to_ptr.vmem [resolvable:$true] %s218
          %224 = dma.hbm_to_vmem [thread:$0]  %s217, 1024, %s219, [#allocation7], 64, 64, 4
        $region16: #{tpu_custom_call.1} parent=11 // pred_fallthru
          _
        // Predicated region
        $region17: #{tpu_custom_call.1} parent=11 // pred_check
          %p225 = pneg %p166
        $region18: #{tpu_custom_call.1} parent=11 // pred_check_branch
          %227 = sbr.rel (%p225) target = $region20
        $region19: #{tpu_custom_call.1} parent=11 // pred_region
          %s229 = ssub.s32 1024, 1024
          %230 = vsyncadd [#allocation7], %s229
          %s231 = sshll.u32 [#allocation8], 4
          %s232 = int_to_ptr.vmem [resolvable:$true] %s231
          %237 = dma.hbm_to_vmem [thread:$0]  %s4, 1024, %s232, [#allocation7], 64, 64, 4
        $region20: #{tpu_custom_call.1} parent=11 // pred_fallthru
          _
      $region12: #{tpu_custom_call.1} parent=5 // pred_fallthru
        _
      %p238 = scmp.lt.s32.totalorder %s18, 2
      // Predicated region
      $region21: #{tpu_custom_call.1} parent=5 // pred_check
        %p239 = pneg %p238
      $region22: #{tpu_custom_call.1} parent=5 // pred_check_branch
        %241 = sbr.rel (%p239) target = $region24
      $region23: #{tpu_custom_call.1} parent=5 // pred_region
        // Predicated region
        $region25: #{tpu_custom_call.1} parent=23 // pred_check
          %p242 = pneg %p61
        $region26: #{tpu_custom_call.1} parent=23 // pred_check_branch
          %244 = sbr.rel (%p242) target = $region28
        $region27: #{tpu_custom_call.1} parent=23 // pred_region
          %s245 = sand.u32 %s51, 1
          %s246 = scalar_lea.sflag [#allocation4], %s245
          %s247 = sand.u32 %s51, 1
          %s248 = smul.addr %s247, 128
          %s249 = scalar_lea.vmem [#allocation3], %s248
          %s250 = smul.u32 32, %s26
          %s252 = ssub.s32 2048, 2048
          %253 = vsyncadd %s246, %s252
          %s254 = sadd.s32 %s27, %s250
          %s255 = smul.addr %s25, 32
          %s256 = sadd.s32 %s254, %s255
          %s257 = smul.addr %s256, 64
          %s258 = scalar_lea.hbm %s0, %s257
          %s259 = sshll.u32 %s249, 4
          %s260 = int_to_ptr.vmem [resolvable:$true] %s259
          %265 = dma.hbm_to_vmem [thread:$0]  %s258, 2048, %s260, %s246, 64, 64, 4
        $region28: #{tpu_custom_call.1} parent=23 // pred_fallthru
          _
        // Predicated region
        $region29: #{tpu_custom_call.1} parent=23 // pred_check
          %p266 = pneg %p113
        $region30: #{tpu_custom_call.1} parent=23 // pred_check_branch
          %268 = sbr.rel (%p266) target = $region32
        $region31: #{tpu_custom_call.1} parent=23 // pred_region
          %p269 = scmp.lt.s32.totalorder %s25, 1
          %s270 = scalar_select %p269, %s25, 1
          %s271 = scalar_lea.vmem %s2, %s270
        $region32: #{tpu_custom_call.1} parent=23 // pred_fallthru
          _
        // Predicated region
        $region33: #{tpu_custom_call.1} parent=23 // pred_check
          %p272 = pneg %p139
        $region34: #{tpu_custom_call.1} parent=23 // pred_check_branch
          %274 = sbr.rel (%p272) target = $region36
        $region35: #{tpu_custom_call.1} parent=23 // pred_region
          %p275 = scmp.lt.s32.totalorder %s25, 1
          %s276 = scalar_select %p275, %s25, 1
          %s277 = scalar_lea.vmem %s3, %s276
        $region36: #{tpu_custom_call.1} parent=23 // pred_fallthru
          _
      $region24: #{tpu_custom_call.1} parent=5 // pred_fallthru
        _
      %p278 = scmp.le.s32.totalorder 1, %s18
      %p279 = scmp.lt.s32.totalorder %s18, 3
      %p280 = pnand %p278, %p279
      %p281 = pneg %p280
      // Predicated region
      $region37: #{tpu_custom_call.1} parent=5 // pred_check
        _
      $region38: #{tpu_custom_call.1} parent=5 // pred_check_branch
        %283 = sbr.rel (%p280) target = $region40
      $region39: #{tpu_custom_call.1} parent=5 // pred_region
        %s284 = ssub.s32 %s18, 1
        %s285 = sand.u32 %s54, 1
        %s286 = scalar_lea.sflag [#allocation4], %s285
        %s287 = sand.u32 %s54, 1
        %s288 = smul.addr %s287, 128
        %s289 = scalar_lea.vmem [#allocation3], %s288
        // Predicated region
        $region41: #{tpu_custom_call.1} parent=39 // pred_check
          %p290 = pneg %p67
        $region42: #{tpu_custom_call.1} parent=39 // pred_check_branch
          %292 = sbr.rel (%p290) target = $region44
        $region43: #{tpu_custom_call.1} parent=39 // pred_region
          %293 = dma.done %s286, 2048
        $region44: #{tpu_custom_call.1} parent=39 // pred_fallthru
          _
        // Predicated region
        $region45: #{tpu_custom_call.1} parent=39 // pred_check
          %p294 = pneg %p93
        $region46: #{tpu_custom_call.1} parent=39 // pred_check_branch
          %296 = sbr.rel (%p294) target = $region48
        $region47: #{tpu_custom_call.1} parent=39 // pred_region
          %297 = dma.done [#allocation7], 1024
        $region48: #{tpu_custom_call.1} parent=39 // pred_fallthru
          _
        // Predicated region
        $region49: #{tpu_custom_call.1} parent=39 // pred_check
          %p298 = pneg %p166
        $region50: #{tpu_custom_call.1} parent=39 // pred_check_branch
          %300 = sbr.rel (%p298) target = $region52
        $region51: #{tpu_custom_call.1} parent=39 // pred_region
          %301 = dma.done [#allocation7], 1024
        $region52: #{tpu_custom_call.1} parent=39 // pred_fallthru
          _
        %s302 = sand.u32 %s54, 1
        %s303 = scalar_lea.sflag [#allocation4], %s302
        %s304 = sand.u32 %s54, 1
        %s305 = smul.addr %s304, 128
        %s306 = scalar_lea.vmem [#allocation3], %s305
        %p307 = pneg %p67
        %p308 = pneg %p64
        %p309 = pneg %p93
        %p310 = pneg %p90
        %p311 = scmp.lt.s32.totalorder %s28, 1
        %s312 = scalar_select %p311, %s28, 1
        %s313 = scalar_lea.vmem %s2, %s312
        %p314 = pneg %p119
        %p315 = pneg %p116
        %p316 = scmp.lt.s32.totalorder %s28, 1
        %s317 = scalar_select %p316, %s28, 1
        %s318 = scalar_lea.vmem %s3, %s317
        %p319 = pneg %p145
        %p320 = pneg %p142
        %p321 = pneg %p166
        %p322 = pneg %p163
        %p323 = pneg %p194
        %p324 = pneg %p191
        %s325 = sand.u32 %s181, 1
        %s326 = scalar_lea.sflag [#allocation5], %s325
        %s327 = sand.u32 %s181, 1
        %s328 = smul.addr %s327, 128
        %s329 = scalar_lea.vmem [#allocation9], %s328
        %s330 = smul.u32 32, %s29
        %s331 = smul.u32 16, %s30
        %p332 = scmp.lt.s32.totalorder %s28, 1
        %s333 = scalar_select %p332, %s28, 1
        %s334 = scalar_lea.vmem %s2, %s333
        %p335 = scmp.lt.s32.totalorder %s28, 1
        %s336 = scalar_select %p335, %s28, 1
        %s337 = scalar_lea.vmem %s3, %s336
        %s338 = smul.u32 32, %s29
        %p340 = scmp.eq.s32.totalorder %s30, 0
        // Predicated region
        $region53: #{tpu_custom_call.1} parent=39 // pred_check
          %p341 = pneg %p340
        $region54: #{tpu_custom_call.1} parent=39 // pred_check_branch
          %343 = sbr.rel (%p341) target = $region56
        $region55: #{tpu_custom_call.1} parent=39 // pred_region
          %344 = vst [vmem:[#allocation2] sm:$0xff] 0.0
          %345 = vst [vmem:[#allocation2 + $0x8] sm:$0xff] 0.0
          %346 = vst [vmem:[#allocation2 + $0x10] sm:$0xff] 0.0
          %347 = vst [vmem:[#allocation2 + $0x18] sm:$0xff] 0.0
          %348 = vst [vmem:[#allocation2 + $0x20] sm:$0xff] 0.0
          %349 = vst [vmem:[#allocation2 + $0x28] sm:$0xff] 0.0
          %350 = vst [vmem:[#allocation2 + $0x30] sm:$0xff] 0.0
          %351 = vst [vmem:[#allocation2 + $0x38] sm:$0xff] 0.0
          %352 = vst [vmem:[#allocation2 + $0x40] sm:$0xff] 0.0
          %353 = vst [vmem:[#allocation2 + $0x48] sm:$0xff] 0.0
          %354 = vst [vmem:[#allocation2 + $0x50] sm:$0xff] 0.0
          %355 = vst [vmem:[#allocation2 + $0x58] sm:$0xff] 0.0
          %356 = vst [vmem:[#allocation2 + $0x60] sm:$0xff] 0.0
          %357 = vst [vmem:[#allocation2 + $0x68] sm:$0xff] 0.0
          %358 = vst [vmem:[#allocation2 + $0x70] sm:$0xff] 0.0
          %359 = vst [vmem:[#allocation2 + $0x78] sm:$0xff] 0.0
          %360 = vst [vmem:[#allocation2 + $0x80] sm:$0xff] 0.0
          %361 = vst [vmem:[#allocation2 + $0x88] sm:$0xff] 0.0
          %362 = vst [vmem:[#allocation2 + $0x90] sm:$0xff] 0.0
          %363 = vst [vmem:[#allocation2 + $0x98] sm:$0xff] 0.0
          %364 = vst [vmem:[#allocation2 + $0xa0] sm:$0xff] 0.0
          %365 = vst [vmem:[#allocation2 + $0xa8] sm:$0xff] 0.0
          %366 = vst [vmem:[#allocation2 + $0xb0] sm:$0xff] 0.0
          %367 = vst [vmem:[#allocation2 + $0xb8] sm:$0xff] 0.0
          %368 = vst [vmem:[#allocation2 + $0xc0] sm:$0xff] 0.0
          %369 = vst [vmem:[#allocation2 + $0xc8] sm:$0xff] 0.0
          %370 = vst [vmem:[#allocation2 + $0xd0] sm:$0xff] 0.0
          %371 = vst [vmem:[#allocation2 + $0xd8] sm:$0xff] 0.0
          %372 = vst [vmem:[#allocation2 + $0xe0] sm:$0xff] 0.0
          %373 = vst [vmem:[#allocation2 + $0xe8] sm:$0xff] 0.0
          %374 = vst [vmem:[#allocation2 + $0xf0] sm:$0xff] 0.0
          %375 = vst [vmem:[#allocation2 + $0xf8] sm:$0xff] 0.0
        $region56: #{tpu_custom_call.1} parent=39 // pred_fallthru
          _
        %v376 = vld [vmem:[#allocation2] sm:$0xff]
        %v377 = vld [vmem:[#allocation2 + $0x8] sm:$0xff]
        %v378 = vld [vmem:[#allocation2 + $0x10] sm:$0xff]
        %v379 = vld [vmem:[#allocation2 + $0x18] sm:$0xff]
        %v380 = vld [vmem:[#allocation2 + $0x20] sm:$0xff]
        %v381 = vld [vmem:[#allocation2 + $0x28] sm:$0xff]
        %v382 = vld [vmem:[#allocation2 + $0x30] sm:$0xff]
        %v383 = vld [vmem:[#allocation2 + $0x38] sm:$0xff]
        %v384 = vld [vmem:[#allocation2 + $0x40] sm:$0xff]
        %v385 = vld [vmem:[#allocation2 + $0x48] sm:$0xff]
        %v386 = vld [vmem:[#allocation2 + $0x50] sm:$0xff]
        %v387 = vld [vmem:[#allocation2 + $0x58] sm:$0xff]
        %v388 = vld [vmem:[#allocation2 + $0x60] sm:$0xff]
        %v389 = vld [vmem:[#allocation2 + $0x68] sm:$0xff]
        %v390 = vld [vmem:[#allocation2 + $0x70] sm:$0xff]
        %v391 = vld [vmem:[#allocation2 + $0x78] sm:$0xff]
        %v392 = vld [vmem:[#allocation2 + $0x80] sm:$0xff]
        %v393 = vld [vmem:[#allocation2 + $0x88] sm:$0xff]
        %v394 = vld [vmem:[#allocation2 + $0x90] sm:$0xff]
        %v395 = vld [vmem:[#allocation2 + $0x98] sm:$0xff]
        %v396 = vld [vmem:[#allocation2 + $0xa0] sm:$0xff]
        %v397 = vld [vmem:[#allocation2 + $0xa8] sm:$0xff]
        %v398 = vld [vmem:[#allocation2 + $0xb0] sm:$0xff]
        %v399 = vld [vmem:[#allocation2 + $0xb8] sm:$0xff]
        %v400 = vld [vmem:[#allocation2 + $0xc0] sm:$0xff]
        %v401 = vld [vmem:[#allocation2 + $0xc8] sm:$0xff]
        %v402 = vld [vmem:[#allocation2 + $0xd0] sm:$0xff]
        %v403 = vld [vmem:[#allocation2 + $0xd8] sm:$0xff]
        %v404 = vld [vmem:[#allocation2 + $0xe0] sm:$0xff]
        %v405 = vld [vmem:[#allocation2 + $0xe8] sm:$0xff]
        %v406 = vld [vmem:[#allocation2 + $0xf0] sm:$0xff]
        %v407 = vld [vmem:[#allocation2 + $0xf8] sm:$0xff]
        %v408 = vld [vmem:[%s289] sm:$0xf]
        %v409 = vld [vmem:[%s289 + $0x4] sm:$0xf]
        %v410 = vld [vmem:[%s289 + $0x8] sm:$0xf]
        %v411 = vld [vmem:[%s289 + $0xc] sm:$0xf]
        %v412 = vld [vmem:[%s289 + $0x10] sm:$0xf]
        %v413 = vld [vmem:[%s289 + $0x14] sm:$0xf]
        %v414 = vld [vmem:[%s289 + $0x18] sm:$0xf]
        %v415 = vld [vmem:[%s289 + $0x1c] sm:$0xf]
        %v416 = vld [vmem:[%s289 + $0x20] sm:$0xf]
        %v417 = vld [vmem:[%s289 + $0x24] sm:$0xf]
        %v418 = vld [vmem:[%s289 + $0x28] sm:$0xf]
        %v419 = vld [vmem:[%s289 + $0x2c] sm:$0xf]
        %v420 = vld [vmem:[%s289 + $0x30] sm:$0xf]
        %v421 = vld [vmem:[%s289 + $0x34] sm:$0xf]
        %v422 = vld [vmem:[%s289 + $0x38] sm:$0xf]
        %v423 = vld [vmem:[%s289 + $0x3c] sm:$0xf]
        %v424 = vld [vmem:[%s289 + $0x40] sm:$0xf]
        %v425 = vld [vmem:[%s289 + $0x44] sm:$0xf]
        %v426 = vld [vmem:[%s289 + $0x48] sm:$0xf]
        %v427 = vld [vmem:[%s289 + $0x4c] sm:$0xf]
        %v428 = vld [vmem:[%s289 + $0x50] sm:$0xf]
        %v429 = vld [vmem:[%s289 + $0x54] sm:$0xf]
        %v430 = vld [vmem:[%s289 + $0x58] sm:$0xf]
        %v431 = vld [vmem:[%s289 + $0x5c] sm:$0xf]
        %v432 = vld [vmem:[%s289 + $0x60] sm:$0xf]
        %v433 = vld [vmem:[%s289 + $0x64] sm:$0xf]
        %v434 = vld [vmem:[%s289 + $0x68] sm:$0xf]
        %v435 = vld [vmem:[%s289 + $0x6c] sm:$0xf]
        %v436 = vld [vmem:[%s289 + $0x70] sm:$0xf]
        %v437 = vld [vmem:[%s289 + $0x74] sm:$0xf]
        %v438 = vld [vmem:[%s289 + $0x78] sm:$0xf]
        %v439 = vld [vmem:[%s289 + $0x7c] sm:$0xf]
        %v440 = vld [vmem:[#allocation6] sm:$0xf]
        %v441 = vld [vmem:[#allocation6 + $0x4] sm:$0xf]
        %v442 = vld [vmem:[#allocation6 + $0x8] sm:$0xf]
        %v443 = vld [vmem:[#allocation6 + $0xc] sm:$0xf]
        %v444 = vld [vmem:[#allocation6 + $0x10] sm:$0xf]
        %v445 = vld [vmem:[#allocation6 + $0x14] sm:$0xf]
        %v446 = vld [vmem:[#allocation6 + $0x18] sm:$0xf]
        %v447 = vld [vmem:[#allocation6 + $0x1c] sm:$0xf]
        %v448 = vld [vmem:[#allocation6 + $0x20] sm:$0xf]
        %v449 = vld [vmem:[#allocation6 + $0x24] sm:$0xf]
        %v450 = vld [vmem:[#allocation6 + $0x28] sm:$0xf]
        %v451 = vld [vmem:[#allocation6 + $0x2c] sm:$0xf]
        %v452 = vld [vmem:[#allocation6 + $0x30] sm:$0xf]
        %v453 = vld [vmem:[#allocation6 + $0x34] sm:$0xf]
        %v454 = vld [vmem:[#allocation6 + $0x38] sm:$0xf]
        %v455 = vld [vmem:[#allocation6 + $0x3c] sm:$0xf]
        %v488 = vunpack.c.l.b16 %v408
        %v489 = vunpack.c.l.b16 %v409
        %v490 = vunpack.c.l.b16 %v410
        %v491 = vunpack.c.l.b16 %v411
        %v492 = vunpack.c.l.b16 %v412
        %v493 = vunpack.c.l.b16 %v413
        %v494 = vunpack.c.l.b16 %v414
        %v495 = vunpack.c.l.b16 %v415
        %v496 = vunpack.c.l.b16 %v416
        %v497 = vunpack.c.l.b16 %v417
        %v498 = vunpack.c.l.b16 %v418
        %v499 = vunpack.c.l.b16 %v419
        %v500 = vunpack.c.l.b16 %v420
        %v501 = vunpack.c.l.b16 %v421
        %v502 = vunpack.c.l.b16 %v422
        %v503 = vunpack.c.l.b16 %v423
        %v504 = vunpack.c.l.b16 %v424
        %v505 = vunpack.c.l.b16 %v425
        %v506 = vunpack.c.l.b16 %v426
        %v507 = vunpack.c.l.b16 %v427
        %v508 = vunpack.c.l.b16 %v428
        %v509 = vunpack.c.l.b16 %v429
        %v510 = vunpack.c.l.b16 %v430
        %v511 = vunpack.c.l.b16 %v431
        %v512 = vunpack.c.l.b16 %v432
        %v513 = vunpack.c.l.b16 %v433
        %v514 = vunpack.c.l.b16 %v434
        %v515 = vunpack.c.l.b16 %v435
        %v516 = vunpack.c.l.b16 %v436
        %v517 = vunpack.c.l.b16 %v437
        %v518 = vunpack.c.l.b16 %v438
        %v519 = vunpack.c.l.b16 %v439
        %v520 = vpack.c.b16 %v489, %v488
        %v521 = vpack.c.b16 %v491, %v490
        %v522 = vpack.c.b16 %v493, %v492
        %v523 = vpack.c.b16 %v495, %v494
        %v524 = vpack.c.b16 %v497, %v496
        %v525 = vpack.c.b16 %v499, %v498
        %v526 = vpack.c.b16 %v501, %v500
        %v527 = vpack.c.b16 %v503, %v502
        %v528 = vpack.c.b16 %v505, %v504
        %v529 = vpack.c.b16 %v507, %v506
        %v530 = vpack.c.b16 %v509, %v508
        %v531 = vpack.c.b16 %v511, %v510
        %v532 = vpack.c.b16 %v513, %v512
        %v533 = vpack.c.b16 %v515, %v514
        %v534 = vpack.c.b16 %v517, %v516
        %v535 = vpack.c.b16 %v519, %v518
        %v568 = vunpack.c.l.b16 %v440
        %v569 = vunpack.c.l.b16 %v441
        %v570 = vunpack.c.l.b16 %v442
        %v571 = vunpack.c.l.b16 %v443
        %v572 = vunpack.c.l.b16 %v444
        %v573 = vunpack.c.l.b16 %v445
        %v574 = vunpack.c.l.b16 %v446
        %v575 = vunpack.c.l.b16 %v447
        %v576 = vunpack.c.l.b16 %v448
        %v577 = vunpack.c.l.b16 %v449
        %v578 = vunpack.c.l.b16 %v450
        %v579 = vunpack.c.l.b16 %v451
        %v580 = vunpack.c.l.b16 %v452
        %v581 = vunpack.c.l.b16 %v453
        %v582 = vunpack.c.l.b16 %v454
        %v583 = vunpack.c.l.b16 %v455
        %v584 = vpack.c.b16 %v569, %v568
        %v585 = vpack.c.b16 %v571, %v570
        %v586 = vpack.c.b16 %v573, %v572
        %v587 = vpack.c.b16 %v575, %v574
        %v588 = vpack.c.b16 %v577, %v576
        %v589 = vpack.c.b16 %v579, %v578
        %v590 = vpack.c.b16 %v581, %v580
        %v591 = vpack.c.b16 %v583, %v582
        %600 = vmatprep.subr.bf16.mxu0 0
        %601 = vmatpush1.bf16.msra.mxu0 %v591
        %602 = vmatprep.subr.bf16.mxu0 0
        %603 = vmatpush1.bf16.msra.mxu0 %v590
        %604 = vmatprep.subr.bf16.mxu0 0
        %605 = vmatpush1.bf16.msra.mxu0 %v589
        %606 = vmatprep.subr.bf16.mxu0 0
        %607 = vmatpush1.bf16.msra.mxu0 %v588
        %608 = vmatprep.subr.bf16.mxu0 0
        %609 = vmatpush1.bf16.msra.mxu0 %v587
        %610 = vmatprep.subr.bf16.mxu0 0
        %611 = vmatpush1.bf16.msra.mxu0 %v586
        %612 = vmatprep.subr.bf16.mxu0 0
        %613 = vmatpush1.bf16.msra.mxu0 %v585
        %614 = vmatprep.subr.bf16.mxu0 0
        %615 = vmatpush1.bf16.msra.mxu0 %v584
        %616 = vmatprep.subr.bf16.mxu0 0
        %617 = vmatpush2.bf16.msra.mxu0 0
        %618 = vmatprep.subr.bf16.mxu0 0
        %619 = vmatpush2.bf16.msra.mxu0 0
        %620 = vmatprep.subr.bf16.mxu0 0
        %621 = vmatpush2.bf16.msra.mxu0 0
        %622 = vmatprep.subr.bf16.mxu0 0
        %623 = vmatpush2.bf16.msra.mxu0 0
        %624 = vmatprep.subr.bf16.mxu0 0
        %625 = vmatpush2.bf16.msra.mxu0 0
        %626 = vmatprep.subr.bf16.mxu0 0
        %627 = vmatpush2.bf16.msra.mxu0 0
        %628 = vmatprep.subr.bf16.mxu0 0
        %629 = vmatpush2.bf16.msra.mxu0 0
        %630 = vmatprep.subr.bf16.mxu0 0
        %631 = vmatpush2.bf16.msra.mxu0 0
        %632 = vmatprep.mubr.bf16.mxu0 0
        %633 = vmatmul.mubr.bf16.gmra.mxu0 %v520
        %v634 = vpop.f32.mrf.mxu0
        %v635 = vadd.f32 0.0, %v634
        %v636 = vpop.f32.mrf.mxu0
        %v637 = vpop.f32.mrf.mxu0
        %v638 = vadd.f32 0.0, %v637
        %v639 = vpop.f32.mrf.mxu0
        %640 = vmatprep.mubr.bf16.mxu0 0
        %641 = vmatmul.mubr.bf16.gmra.mxu0 %v521
        %v642 = vpop.f32.mrf.mxu0
        %v643 = vadd.f32 0.0, %v642
        %v644 = vpop.f32.mrf.mxu0
        %v645 = vpop.f32.mrf.mxu0
        %v646 = vadd.f32 0.0, %v645
        %v647 = vpop.f32.mrf.mxu0
        %648 = vmatprep.mubr.bf16.mxu0 0
        %649 = vmatmul.mubr.bf16.gmra.mxu0 %v522
        %v650 = vpop.f32.mrf.mxu0
        %v651 = vadd.f32 0.0, %v650
        %v652 = vpop.f32.mrf.mxu0
        %v653 = vpop.f32.mrf.mxu0
        %v654 = vadd.f32 0.0, %v653
        %v655 = vpop.f32.mrf.mxu0
        %656 = vmatprep.mubr.bf16.mxu0 0
        %657 = vmatmul.mubr.bf16.gmra.mxu0 %v523
        %v658 = vpop.f32.mrf.mxu0
        %v659 = vadd.f32 0.0, %v658
        %v660 = vpop.f32.mrf.mxu0
        %v661 = vpop.f32.mrf.mxu0
        %v662 = vadd.f32 0.0, %v661
        %v663 = vpop.f32.mrf.mxu0
        %664 = vmatprep.mubr.bf16.mxu0 0
        %665 = vmatmul.mubr.bf16.gmra.mxu0 %v524
        %v666 = vpop.f32.mrf.mxu0
        %v667 = vadd.f32 0.0, %v666
        %v668 = vpop.f32.mrf.mxu0
        %v669 = vpop.f32.mrf.mxu0
        %v670 = vadd.f32 0.0, %v669
        %v671 = vpop.f32.mrf.mxu0
        %672 = vmatprep.mubr.bf16.mxu0 0
        %673 = vmatmul.mubr.bf16.gmra.mxu0 %v525
        %v674 = vpop.f32.mrf.mxu0
        %v675 = vadd.f32 0.0, %v674
        %v676 = vpop.f32.mrf.mxu0
        %v677 = vpop.f32.mrf.mxu0
        %v678 = vadd.f32 0.0, %v677
        %v679 = vpop.f32.mrf.mxu0
        %680 = vmatprep.mubr.bf16.mxu0 0
        %681 = vmatmul.mubr.bf16.gmra.mxu0 %v526
        %v682 = vpop.f32.mrf.mxu0
        %v683 = vadd.f32 0.0, %v682
        %v684 = vpop.f32.mrf.mxu0
        %v685 = vpop.f32.mrf.mxu0
        %v686 = vadd.f32 0.0, %v685
        %v687 = vpop.f32.mrf.mxu0
        %688 = vmatprep.mubr.bf16.mxu0 0
        %689 = vmatmul.mubr.bf16.gmra.mxu0 %v527
        %v690 = vpop.f32.mrf.mxu0
        %v691 = vadd.f32 0.0, %v690
        %v692 = vpop.f32.mrf.mxu0
        %v693 = vpop.f32.mrf.mxu0
        %v694 = vadd.f32 0.0, %v693
        %v695 = vpop.f32.mrf.mxu0
        %696 = vmatprep.mubr.bf16.mxu0 0
        %697 = vmatmul.mubr.bf16.gmra.mxu0 %v528
        %v698 = vpop.f32.mrf.mxu0
        %v699 = vadd.f32 0.0, %v698
        %v700 = vpop.f32.mrf.mxu0
        %v701 = vpop.f32.mrf.mxu0
        %v702 = vadd.f32 0.0, %v701
        %v703 = vpop.f32.mrf.mxu0
        %704 = vmatprep.mubr.bf16.mxu0 0
        %705 = vmatmul.mubr.bf16.gmra.mxu0 %v529
        %v706 = vpop.f32.mrf.mxu0
        %v707 = vadd.f32 0.0, %v706
        %v708 = vpop.f32.mrf.mxu0
        %v709 = vpop.f32.mrf.mxu0
        %v710 = vadd.f32 0.0, %v709
        %v711 = vpop.f32.mrf.mxu0
        %712 = vmatprep.mubr.bf16.mxu0 0
        %713 = vmatmul.mubr.bf16.gmra.mxu0 %v530
        %v714 = vpop.f32.mrf.mxu0
        %v715 = vadd.f32 0.0, %v714
        %v716 = vpop.f32.mrf.mxu0
        %v717 = vpop.f32.mrf.mxu0
        %v718 = vadd.f32 0.0, %v717
        %v719 = vpop.f32.mrf.mxu0
        %720 = vmatprep.mubr.bf16.mxu0 0
        %721 = vmatmul.mubr.bf16.gmra.mxu0 %v531
        %v722 = vpop.f32.mrf.mxu0
        %v723 = vadd.f32 0.0, %v722
        %v724 = vpop.f32.mrf.mxu0
        %v725 = vpop.f32.mrf.mxu0
        %v726 = vadd.f32 0.0, %v725
        %v727 = vpop.f32.mrf.mxu0
        %728 = vmatprep.mubr.bf16.mxu0 0
        %729 = vmatmul.mubr.bf16.gmra.mxu0 %v532
        %v730 = vpop.f32.mrf.mxu0
        %v731 = vadd.f32 0.0, %v730
        %v732 = vpop.f32.mrf.mxu0
        %v733 = vpop.f32.mrf.mxu0
        %v734 = vadd.f32 0.0, %v733
        %v735 = vpop.f32.mrf.mxu0
        %736 = vmatprep.mubr.bf16.mxu0 0
        %737 = vmatmul.mubr.bf16.gmra.mxu0 %v533
        %v738 = vpop.f32.mrf.mxu0
        %v739 = vadd.f32 0.0, %v738
        %v740 = vpop.f32.mrf.mxu0
        %v741 = vpop.f32.mrf.mxu0
        %v742 = vadd.f32 0.0, %v741
        %v743 = vpop.f32.mrf.mxu0
        %744 = vmatprep.mubr.bf16.mxu0 0
        %745 = vmatmul.mubr.bf16.gmra.mxu0 %v534
        %v746 = vpop.f32.mrf.mxu0
        %v747 = vadd.f32 0.0, %v746
        %v748 = vpop.f32.mrf.mxu0
        %v749 = vpop.f32.mrf.mxu0
        %v750 = vadd.f32 0.0, %v749
        %v751 = vpop.f32.mrf.mxu0
        %752 = vmatprep.mubr.bf16.mxu0 0
        %753 = vmatmul.mubr.bf16.gmra.mxu0 %v535
        %v754 = vpop.f32.mrf.mxu0
        %v755 = vadd.f32 0.0, %v754
        %v756 = vpop.f32.mrf.mxu0
        %v757 = vpop.f32.mrf.mxu0
        %v758 = vadd.f32 0.0, %v757
        %v759 = vpop.f32.mrf.mxu0
        %760 = vdwg.mxu0
        %v761 = vadd.f32 %v376, %v635
        %v762 = vadd.f32 %v377, %v638
        %v763 = vadd.f32 %v378, %v643
        %v764 = vadd.f32 %v379, %v646
        %v765 = vadd.f32 %v380, %v651
        %v766 = vadd.f32 %v381, %v654
        %v767 = vadd.f32 %v382, %v659
        %v768 = vadd.f32 %v383, %v662
        %v769 = vadd.f32 %v384, %v667
        %v770 = vadd.f32 %v385, %v670
        %v771 = vadd.f32 %v386, %v675
        %v772 = vadd.f32 %v387, %v678
        %v773 = vadd.f32 %v388, %v683
        %v774 = vadd.f32 %v389, %v686
        %v775 = vadd.f32 %v390, %v691
        %v776 = vadd.f32 %v391, %v694
        %v777 = vadd.f32 %v392, %v699
        %v778 = vadd.f32 %v393, %v702
        %v779 = vadd.f32 %v394, %v707
        %v780 = vadd.f32 %v395, %v710
        %v781 = vadd.f32 %v396, %v715
        %v782 = vadd.f32 %v397, %v718
        %v783 = vadd.f32 %v398, %v723
        %v784 = vadd.f32 %v399, %v726
        %v785 = vadd.f32 %v400, %v731
        %v786 = vadd.f32 %v401, %v734
        %v787 = vadd.f32 %v402, %v739
        %v788 = vadd.f32 %v403, %v742
        %v789 = vadd.f32 %v404, %v747
        %v790 = vadd.f32 %v405, %v750
        %v791 = vadd.f32 %v406, %v755
        %v792 = vadd.f32 %v407, %v758
        %793 = vst [vmem:[#allocation2] sm:$0xff] %v761
        %794 = vst [vmem:[#allocation2 + $0x8] sm:$0xff] %v762
        %795 = vst [vmem:[#allocation2 + $0x10] sm:$0xff] %v763
        %796 = vst [vmem:[#allocation2 + $0x18] sm:$0xff] %v764
        %797 = vst [vmem:[#allocation2 + $0x20] sm:$0xff] %v765
        %798 = vst [vmem:[#allocation2 + $0x28] sm:$0xff] %v766
        %799 = vst [vmem:[#allocation2 + $0x30] sm:$0xff] %v767
        %800 = vst [vmem:[#allocation2 + $0x38] sm:$0xff] %v768
        %801 = vst [vmem:[#allocation2 + $0x40] sm:$0xff] %v769
        %802 = vst [vmem:[#allocation2 + $0x48] sm:$0xff] %v770
        %803 = vst [vmem:[#allocation2 + $0x50] sm:$0xff] %v771
        %804 = vst [vmem:[#allocation2 + $0x58] sm:$0xff] %v772
        %805 = vst [vmem:[#allocation2 + $0x60] sm:$0xff] %v773
        %806 = vst [vmem:[#allocation2 + $0x68] sm:$0xff] %v774
        %807 = vst [vmem:[#allocation2 + $0x70] sm:$0xff] %v775
        %808 = vst [vmem:[#allocation2 + $0x78] sm:$0xff] %v776
        %809 = vst [vmem:[#allocation2 + $0x80] sm:$0xff] %v777
        %810 = vst [vmem:[#allocation2 + $0x88] sm:$0xff] %v778
        %811 = vst [vmem:[#allocation2 + $0x90] sm:$0xff] %v779
        %812 = vst [vmem:[#allocation2 + $0x98] sm:$0xff] %v780
        %813 = vst [vmem:[#allocation2 + $0xa0] sm:$0xff] %v781
        %814 = vst [vmem:[#allocation2 + $0xa8] sm:$0xff] %v782
        %815 = vst [vmem:[#allocation2 + $0xb0] sm:$0xff] %v783
        %816 = vst [vmem:[#allocation2 + $0xb8] sm:$0xff] %v784
        %817 = vst [vmem:[#allocation2 + $0xc0] sm:$0xff] %v785
        %818 = vst [vmem:[#allocation2 + $0xc8] sm:$0xff] %v786
        %819 = vst [vmem:[#allocation2 + $0xd0] sm:$0xff] %v787
        %820 = vst [vmem:[#allocation2 + $0xd8] sm:$0xff] %v788
        %821 = vst [vmem:[#allocation2 + $0xe0] sm:$0xff] %v789
        %822 = vst [vmem:[#allocation2 + $0xe8] sm:$0xff] %v790
        %823 = vst [vmem:[#allocation2 + $0xf0] sm:$0xff] %v791
        %824 = vst [vmem:[#allocation2 + $0xf8] sm:$0xff] %v792
        // Predicated region
        $region57: #{tpu_custom_call.1} parent=39 // pred_check
          %p825 = pneg %p340
        $region58: #{tpu_custom_call.1} parent=39 // pred_check_branch
          %827 = sbr.rel (%p825) target = $region60
        $region59: #{tpu_custom_call.1} parent=39 // pred_region
          %v828 = vld [vmem:[#allocation2] sm:$0xff]
          %v829 = vld [vmem:[#allocation2 + $0x8] sm:$0xff]
          %v830 = vld [vmem:[#allocation2 + $0x10] sm:$0xff]
          %v831 = vld [vmem:[#allocation2 + $0x18] sm:$0xff]
          %v832 = vld [vmem:[#allocation2 + $0x20] sm:$0xff]
          %v833 = vld [vmem:[#allocation2 + $0x28] sm:$0xff]
          %v834 = vld [vmem:[#allocation2 + $0x30] sm:$0xff]
          %v835 = vld [vmem:[#allocation2 + $0x38] sm:$0xff]
          %v836 = vld [vmem:[#allocation2 + $0x40] sm:$0xff]
          %v837 = vld [vmem:[#allocation2 + $0x48] sm:$0xff]
          %v838 = vld [vmem:[#allocation2 + $0x50] sm:$0xff]
          %v839 = vld [vmem:[#allocation2 + $0x58] sm:$0xff]
          %v840 = vld [vmem:[#allocation2 + $0x60] sm:$0xff]
          %v841 = vld [vmem:[#allocation2 + $0x68] sm:$0xff]
          %v842 = vld [vmem:[#allocation2 + $0x70] sm:$0xff]
          %v843 = vld [vmem:[#allocation2 + $0x78] sm:$0xff]
          %v844 = vld [vmem:[#allocation2 + $0x80] sm:$0xff]
          %v845 = vld [vmem:[#allocation2 + $0x88] sm:$0xff]
          %v846 = vld [vmem:[#allocation2 + $0x90] sm:$0xff]
          %v847 = vld [vmem:[#allocation2 + $0x98] sm:$0xff]
          %v848 = vld [vmem:[#allocation2 + $0xa0] sm:$0xff]
          %v849 = vld [vmem:[#allocation2 + $0xa8] sm:$0xff]
          %v850 = vld [vmem:[#allocation2 + $0xb0] sm:$0xff]
          %v851 = vld [vmem:[#allocation2 + $0xb8] sm:$0xff]
          %v852 = vld [vmem:[#allocation2 + $0xc0] sm:$0xff]
          %v853 = vld [vmem:[#allocation2 + $0xc8] sm:$0xff]
          %v854 = vld [vmem:[#allocation2 + $0xd0] sm:$0xff]
          %v855 = vld [vmem:[#allocation2 + $0xd8] sm:$0xff]
          %v856 = vld [vmem:[#allocation2 + $0xe0] sm:$0xff]
          %v857 = vld [vmem:[#allocation2 + $0xe8] sm:$0xff]
          %v858 = vld [vmem:[#allocation2 + $0xf0] sm:$0xff]
          %v859 = vld [vmem:[#allocation2 + $0xf8] sm:$0xff]
          %v860 = vld [vmem:[%s337] sm:$0x1]
          %v862 = vlaneseq
          %v863 = vshrl.u32 %v862, 7
          %v864 = vsub.s32 0, %v863
          %v865 = vrot.slane %v860, %v864
          %v867 = vmul.f32 %v865, %v828
          %v868 = vmul.f32 %v865, %v829
          %v869 = vmul.f32 %v865, %v830
          %v870 = vmul.f32 %v865, %v831
          %v871 = vmul.f32 %v865, %v832
          %v872 = vmul.f32 %v865, %v833
          %v873 = vmul.f32 %v865, %v834
          %v874 = vmul.f32 %v865, %v835
          %v875 = vmul.f32 %v865, %v836
          %v876 = vmul.f32 %v865, %v837
          %v877 = vmul.f32 %v865, %v838
          %v878 = vmul.f32 %v865, %v839
          %v879 = vmul.f32 %v865, %v840
          %v880 = vmul.f32 %v865, %v841
          %v881 = vmul.f32 %v865, %v842
          %v882 = vmul.f32 %v865, %v843
          %v883 = vmul.f32 %v865, %v844
          %v884 = vmul.f32 %v865, %v845
          %v885 = vmul.f32 %v865, %v846
          %v886 = vmul.f32 %v865, %v847
          %v887 = vmul.f32 %v865, %v848
          %v888 = vmul.f32 %v865, %v849
          %v889 = vmul.f32 %v865, %v850
          %v890 = vmul.f32 %v865, %v851
          %v891 = vmul.f32 %v865, %v852
          %v892 = vmul.f32 %v865, %v853
          %v893 = vmul.f32 %v865, %v854
          %v894 = vmul.f32 %v865, %v855
          %v895 = vmul.f32 %v865, %v856
          %v896 = vmul.f32 %v865, %v857
          %v897 = vmul.f32 %v865, %v858
          %v898 = vmul.f32 %v865, %v859
          %v899 = vpack.c.bf16 %v868, %v867
          %v900 = vpack.c.bf16 %v870, %v869
          %v901 = vpack.c.bf16 %v872, %v871
          %v902 = vpack.c.bf16 %v874, %v873
          %v903 = vpack.c.bf16 %v876, %v875
          %v904 = vpack.c.bf16 %v878, %v877
          %v905 = vpack.c.bf16 %v880, %v879
          %v906 = vpack.c.bf16 %v882, %v881
          %v907 = vpack.c.bf16 %v884, %v883
          %v908 = vpack.c.bf16 %v886, %v885
          %v909 = vpack.c.bf16 %v888, %v887
          %v910 = vpack.c.bf16 %v890, %v889
          %v911 = vpack.c.bf16 %v892, %v891
          %v912 = vpack.c.bf16 %v894, %v893
          %v913 = vpack.c.bf16 %v896, %v895
          %v914 = vpack.c.bf16 %v898, %v897
          %v915 = vld [vmem:[#allocation8] sm:$0xf]
          %v916 = vld [vmem:[#allocation8 + $0x4] sm:$0xf]
          %v917 = vld [vmem:[#allocation8 + $0x8] sm:$0xf]
          %v918 = vld [vmem:[#allocation8 + $0xc] sm:$0xf]
          %v919 = vld [vmem:[#allocation8 + $0x10] sm:$0xf]
          %v920 = vld [vmem:[#allocation8 + $0x14] sm:$0xf]
          %v921 = vld [vmem:[#allocation8 + $0x18] sm:$0xf]
          %v922 = vld [vmem:[#allocation8 + $0x1c] sm:$0xf]
          %v923 = vld [vmem:[#allocation8 + $0x20] sm:$0xf]
          %v924 = vld [vmem:[#allocation8 + $0x24] sm:$0xf]
          %v925 = vld [vmem:[#allocation8 + $0x28] sm:$0xf]
          %v926 = vld [vmem:[#allocation8 + $0x2c] sm:$0xf]
          %v927 = vld [vmem:[#allocation8 + $0x30] sm:$0xf]
          %v928 = vld [vmem:[#allocation8 + $0x34] sm:$0xf]
          %v929 = vld [vmem:[#allocation8 + $0x38] sm:$0xf]
          %v930 = vld [vmem:[#allocation8 + $0x3c] sm:$0xf]
          %v947 = vunpack.c.l.b16 %v915
          %v948 = vunpack.c.l.b16 %v916
          %v949 = vunpack.c.l.b16 %v917
          %v950 = vunpack.c.l.b16 %v918
          %v951 = vunpack.c.l.b16 %v919
          %v952 = vunpack.c.l.b16 %v920
          %v953 = vunpack.c.l.b16 %v921
          %v954 = vunpack.c.l.b16 %v922
          %v955 = vunpack.c.l.b16 %v923
          %v956 = vunpack.c.l.b16 %v924
          %v957 = vunpack.c.l.b16 %v925
          %v958 = vunpack.c.l.b16 %v926
          %v959 = vunpack.c.l.b16 %v927
          %v960 = vunpack.c.l.b16 %v928
          %v961 = vunpack.c.l.b16 %v929
          %v962 = vunpack.c.l.b16 %v930
          %v963 = vpack.c.b16 %v948, %v947
          %v964 = vpack.c.b16 %v950, %v949
          %v965 = vpack.c.b16 %v952, %v951
          %v966 = vpack.c.b16 %v954, %v953
          %v967 = vpack.c.b16 %v956, %v955
          %v968 = vpack.c.b16 %v958, %v957
          %v969 = vpack.c.b16 %v960, %v959
          %v970 = vpack.c.b16 %v962, %v961
          %979 = vmatprep.subr.bf16.mxu0 0
          %980 = vmatpush1.bf16.msra.mxu0 %v970
          %981 = vmatprep.subr.bf16.mxu0 0
          %982 = vmatpush1.bf16.msra.mxu0 %v969
          %983 = vmatprep.subr.bf16.mxu0 0
          %984 = vmatpush1.bf16.msra.mxu0 %v968
          %985 = vmatprep.subr.bf16.mxu0 0
          %986 = vmatpush1.bf16.msra.mxu0 %v967
          %987 = vmatprep.subr.bf16.mxu0 0
          %988 = vmatpush1.bf16.msra.mxu0 %v966
          %989 = vmatprep.subr.bf16.mxu0 0
          %990 = vmatpush1.bf16.msra.mxu0 %v965
          %991 = vmatprep.subr.bf16.mxu0 0
          %992 = vmatpush1.bf16.msra.mxu0 %v964
          %993 = vmatprep.subr.bf16.mxu0 0
          %994 = vmatpush1.bf16.msra.mxu0 %v963
          %995 = vmatprep.subr.bf16.mxu0 0
          %996 = vmatpush2.bf16.msra.mxu0 0
          %997 = vmatprep.subr.bf16.mxu0 0
          %998 = vmatpush2.bf16.msra.mxu0 0
          %999 = vmatprep.subr.bf16.mxu0 0
          %1000 = vmatpush2.bf16.msra.mxu0 0
          %1001 = vmatprep.subr.bf16.mxu0 0
          %1002 = vmatpush2.bf16.msra.mxu0 0
          %1003 = vmatprep.subr.bf16.mxu0 0
          %1004 = vmatpush2.bf16.msra.mxu0 0
          %1005 = vmatprep.subr.bf16.mxu0 0
          %1006 = vmatpush2.bf16.msra.mxu0 0
          %1007 = vmatprep.subr.bf16.mxu0 0
          %1008 = vmatpush2.bf16.msra.mxu0 0
          %1009 = vmatprep.subr.bf16.mxu0 0
          %1010 = vmatpush2.bf16.msra.mxu0 0
          %1011 = vmatprep.mubr.bf16.mxu0 0
          %1012 = vmatmul.mubr.bf16.gmra.mxu0 %v899
          %v1013 = vpop.f32.mrf.mxu0
          %v1014 = vadd.f32 0.0, %v1013
          %v1015 = vpop.f32.mrf.mxu0
          %v1016 = vpop.f32.mrf.mxu0
          %v1017 = vadd.f32 0.0, %v1016
          %v1018 = vpop.f32.mrf.mxu0
          %1019 = vmatprep.mubr.bf16.mxu0 0
          %1020 = vmatmul.mubr.bf16.gmra.mxu0 %v900
          %v1021 = vpop.f32.mrf.mxu0
          %v1022 = vadd.f32 0.0, %v1021
          %v1023 = vpop.f32.mrf.mxu0
          %v1024 = vpop.f32.mrf.mxu0
          %v1025 = vadd.f32 0.0, %v1024
          %v1026 = vpop.f32.mrf.mxu0
          %1027 = vmatprep.mubr.bf16.mxu0 0
          %1028 = vmatmul.mubr.bf16.gmra.mxu0 %v901
          %v1029 = vpop.f32.mrf.mxu0
          %v1030 = vadd.f32 0.0, %v1029
          %v1031 = vpop.f32.mrf.mxu0
          %v1032 = vpop.f32.mrf.mxu0
          %v1033 = vadd.f32 0.0, %v1032
          %v1034 = vpop.f32.mrf.mxu0
          %1035 = vmatprep.mubr.bf16.mxu0 0
          %1036 = vmatmul.mubr.bf16.gmra.mxu0 %v902
          %v1037 = vpop.f32.mrf.mxu0
          %v1038 = vadd.f32 0.0, %v1037
          %v1039 = vpop.f32.mrf.mxu0
          %v1040 = vpop.f32.mrf.mxu0
          %v1041 = vadd.f32 0.0, %v1040
          %v1042 = vpop.f32.mrf.mxu0
          %1043 = vmatprep.mubr.bf16.mxu0 0
          %1044 = vmatmul.mubr.bf16.gmra.mxu0 %v903
          %v1045 = vpop.f32.mrf.mxu0
          %v1046 = vadd.f32 0.0, %v1045
          %v1047 = vpop.f32.mrf.mxu0
          %v1048 = vpop.f32.mrf.mxu0
          %v1049 = vadd.f32 0.0, %v1048
          %v1050 = vpop.f32.mrf.mxu0
          %1051 = vmatprep.mubr.bf16.mxu0 0
          %1052 = vmatmul.mubr.bf16.gmra.mxu0 %v904
          %v1053 = vpop.f32.mrf.mxu0
          %v1054 = vadd.f32 0.0, %v1053
          %v1055 = vpop.f32.mrf.mxu0
          %v1056 = vpop.f32.mrf.mxu0
          %v1057 = vadd.f32 0.0, %v1056
          %v1058 = vpop.f32.mrf.mxu0
          %1059 = vmatprep.mubr.bf16.mxu0 0
          %1060 = vmatmul.mubr.bf16.gmra.mxu0 %v905
          %v1061 = vpop.f32.mrf.mxu0
          %v1062 = vadd.f32 0.0, %v1061
          %v1063 = vpop.f32.mrf.mxu0
          %v1064 = vpop.f32.mrf.mxu0
          %v1065 = vadd.f32 0.0, %v1064
          %v1066 = vpop.f32.mrf.mxu0
          %1067 = vmatprep.mubr.bf16.mxu0 0
          %1068 = vmatmul.mubr.bf16.gmra.mxu0 %v906
          %v1069 = vpop.f32.mrf.mxu0
          %v1070 = vadd.f32 0.0, %v1069
          %v1071 = vpop.f32.mrf.mxu0
          %v1072 = vpop.f32.mrf.mxu0
          %v1073 = vadd.f32 0.0, %v1072
          %v1074 = vpop.f32.mrf.mxu0
          %1075 = vmatprep.mubr.bf16.mxu0 0
          %1076 = vmatmul.mubr.bf16.gmra.mxu0 %v907
          %v1077 = vpop.f32.mrf.mxu0
          %v1078 = vadd.f32 0.0, %v1077
          %v1079 = vpop.f32.mrf.mxu0
          %v1080 = vpop.f32.mrf.mxu0
          %v1081 = vadd.f32 0.0, %v1080
          %v1082 = vpop.f32.mrf.mxu0
          %1083 = vmatprep.mubr.bf16.mxu0 0
          %1084 = vmatmul.mubr.bf16.gmra.mxu0 %v908
          %v1085 = vpop.f32.mrf.mxu0
          %v1086 = vadd.f32 0.0, %v1085
          %v1087 = vpop.f32.mrf.mxu0
          %v1088 = vpop.f32.mrf.mxu0
          %v1089 = vadd.f32 0.0, %v1088
          %v1090 = vpop.f32.mrf.mxu0
          %1091 = vmatprep.mubr.bf16.mxu0 0
          %1092 = vmatmul.mubr.bf16.gmra.mxu0 %v909
          %v1093 = vpop.f32.mrf.mxu0
          %v1094 = vadd.f32 0.0, %v1093
          %v1095 = vpop.f32.mrf.mxu0
          %v1096 = vpop.f32.mrf.mxu0
          %v1097 = vadd.f32 0.0, %v1096
          %v1098 = vpop.f32.mrf.mxu0
          %1099 = vmatprep.mubr.bf16.mxu0 0
          %1100 = vmatmul.mubr.bf16.gmra.mxu0 %v910
          %v1101 = vpop.f32.mrf.mxu0
          %v1102 = vadd.f32 0.0, %v1101
          %v1103 = vpop.f32.mrf.mxu0
          %v1104 = vpop.f32.mrf.mxu0
          %v1105 = vadd.f32 0.0, %v1104
          %v1106 = vpop.f32.mrf.mxu0
          %1107 = vmatprep.mubr.bf16.mxu0 0
          %1108 = vmatmul.mubr.bf16.gmra.mxu0 %v911
          %v1109 = vpop.f32.mrf.mxu0
          %v1110 = vadd.f32 0.0, %v1109
          %v1111 = vpop.f32.mrf.mxu0
          %v1112 = vpop.f32.mrf.mxu0
          %v1113 = vadd.f32 0.0, %v1112
          %v1114 = vpop.f32.mrf.mxu0
          %1115 = vmatprep.mubr.bf16.mxu0 0
          %1116 = vmatmul.mubr.bf16.gmra.mxu0 %v912
          %v1117 = vpop.f32.mrf.mxu0
          %v1118 = vadd.f32 0.0, %v1117
          %v1119 = vpop.f32.mrf.mxu0
          %v1120 = vpop.f32.mrf.mxu0
          %v1121 = vadd.f32 0.0, %v1120
          %v1122 = vpop.f32.mrf.mxu0
          %1123 = vmatprep.mubr.bf16.mxu0 0
          %1124 = vmatmul.mubr.bf16.gmra.mxu0 %v913
          %v1125 = vpop.f32.mrf.mxu0
          %v1126 = vadd.f32 0.0, %v1125
          %v1127 = vpop.f32.mrf.mxu0
          %v1128 = vpop.f32.mrf.mxu0
          %v1129 = vadd.f32 0.0, %v1128
          %v1130 = vpop.f32.mrf.mxu0
          %1131 = vmatprep.mubr.bf16.mxu0 0
          %1132 = vmatmul.mubr.bf16.gmra.mxu0 %v914
          %v1133 = vpop.f32.mrf.mxu0
          %v1134 = vadd.f32 0.0, %v1133
          %v1135 = vpop.f32.mrf.mxu0
          %v1136 = vpop.f32.mrf.mxu0
          %v1137 = vadd.f32 0.0, %v1136
          %v1138 = vpop.f32.mrf.mxu0
          %1139 = vdwg.mxu0
          %v1140 = vld [vmem:[%s334] sm:$0x1]
          %v1142 = vlaneseq
          %v1143 = vshrl.u32 %v1142, 7
          %v1144 = vsub.s32 0, %v1143
          %v1145 = vrot.slane %v1140, %v1144
          %v1147 = vadd.f32 %v828, %v1145
          %v1148 = vadd.f32 %v829, %v1145
          %v1149 = vadd.f32 %v830, %v1145
          %v1150 = vadd.f32 %v831, %v1145
          %v1151 = vadd.f32 %v832, %v1145
          %v1152 = vadd.f32 %v833, %v1145
          %v1153 = vadd.f32 %v834, %v1145
          %v1154 = vadd.f32 %v835, %v1145
          %v1155 = vadd.f32 %v836, %v1145
          %v1156 = vadd.f32 %v837, %v1145
          %v1157 = vadd.f32 %v838, %v1145
          %v1158 = vadd.f32 %v839, %v1145
          %v1159 = vadd.f32 %v840, %v1145
          %v1160 = vadd.f32 %v841, %v1145
          %v1161 = vadd.f32 %v842, %v1145
          %v1162 = vadd.f32 %v843, %v1145
          %v1163 = vadd.f32 %v844, %v1145
          %v1164 = vadd.f32 %v845, %v1145
          %v1165 = vadd.f32 %v846, %v1145
          %v1166 = vadd.f32 %v847, %v1145
          %v1167 = vadd.f32 %v848, %v1145
          %v1168 = vadd.f32 %v849, %v1145
          %v1169 = vadd.f32 %v850, %v1145
          %v1170 = vadd.f32 %v851, %v1145
          %v1171 = vadd.f32 %v852, %v1145
          %v1172 = vadd.f32 %v853, %v1145
          %v1173 = vadd.f32 %v854, %v1145
          %v1174 = vadd.f32 %v855, %v1145
          %v1175 = vadd.f32 %v856, %v1145
          %v1176 = vadd.f32 %v857, %v1145
          %v1177 = vadd.f32 %v858, %v1145
          %v1178 = vadd.f32 %v859, %v1145
          %v1179 = vadd.f32 %v1147, %v1014
          %v1180 = vadd.f32 %v1148, %v1017
          %v1181 = vadd.f32 %v1149, %v1022
          %v1182 = vadd.f32 %v1150, %v1025
          %v1183 = vadd.f32 %v1151, %v1030
          %v1184 = vadd.f32 %v1152, %v1033
          %v1185 = vadd.f32 %v1153, %v1038
          %v1186 = vadd.f32 %v1154, %v1041
          %v1187 = vadd.f32 %v1155, %v1046
          %v1188 = vadd.f32 %v1156, %v1049
          %v1189 = vadd.f32 %v1157, %v1054
          %v1190 = vadd.f32 %v1158, %v1057
          %v1191 = vadd.f32 %v1159, %v1062
          %v1192 = vadd.f32 %v1160, %v1065
          %v1193 = vadd.f32 %v1161, %v1070
          %v1194 = vadd.f32 %v1162, %v1073
          %v1195 = vadd.f32 %v1163, %v1078
          %v1196 = vadd.f32 %v1164, %v1081
          %v1197 = vadd.f32 %v1165, %v1086
          %v1198 = vadd.f32 %v1166, %v1089
          %v1199 = vadd.f32 %v1167, %v1094
          %v1200 = vadd.f32 %v1168, %v1097
          %v1201 = vadd.f32 %v1169, %v1102
          %v1202 = vadd.f32 %v1170, %v1105
          %v1203 = vadd.f32 %v1171, %v1110
          %v1204 = vadd.f32 %v1172, %v1113
          %v1205 = vadd.f32 %v1173, %v1118
          %v1206 = vadd.f32 %v1174, %v1121
          %v1207 = vadd.f32 %v1175, %v1126
          %v1208 = vadd.f32 %v1176, %v1129
          %v1209 = vadd.f32 %v1177, %v1134
          %v1210 = vadd.f32 %v1178, %v1137
          %v1211 = vpack.c.bf16 %v1180, %v1179
          %v1212 = vpack.c.bf16 %v1182, %v1181
          %v1213 = vpack.c.bf16 %v1184, %v1183
          %v1214 = vpack.c.bf16 %v1186, %v1185
          %v1215 = vpack.c.bf16 %v1188, %v1187
          %v1216 = vpack.c.bf16 %v1190, %v1189
          %v1217 = vpack.c.bf16 %v1192, %v1191
          %v1218 = vpack.c.bf16 %v1194, %v1193
          %v1219 = vpack.c.bf16 %v1196, %v1195
          %v1220 = vpack.c.bf16 %v1198, %v1197
          %v1221 = vpack.c.bf16 %v1200, %v1199
          %v1222 = vpack.c.bf16 %v1202, %v1201
          %v1223 = vpack.c.bf16 %v1204, %v1203
          %v1224 = vpack.c.bf16 %v1206, %v1205
          %v1225 = vpack.c.bf16 %v1208, %v1207
          %v1226 = vpack.c.bf16 %v1210, %v1209
          %v1243 = vunpack.c.l.b16 %v1211
          %v1244 = vunpack.c.h.b16 %v1211
          %v1245 = vunpack.c.l.b16 %v1212
          %v1246 = vunpack.c.h.b16 %v1212
          %v1247 = vunpack.c.l.b16 %v1213
          %v1248 = vunpack.c.h.b16 %v1213
          %v1249 = vunpack.c.l.b16 %v1214
          %v1250 = vunpack.c.h.b16 %v1214
          %v1251 = vunpack.c.l.b16 %v1215
          %v1252 = vunpack.c.h.b16 %v1215
          %v1253 = vunpack.c.l.b16 %v1216
          %v1254 = vunpack.c.h.b16 %v1216
          %v1255 = vunpack.c.l.b16 %v1217
          %v1256 = vunpack.c.h.b16 %v1217
          %v1257 = vunpack.c.l.b16 %v1218
          %v1258 = vunpack.c.h.b16 %v1218
          %v1259 = vunpack.c.l.b16 %v1219
          %v1260 = vunpack.c.h.b16 %v1219
          %v1261 = vunpack.c.l.b16 %v1220
          %v1262 = vunpack.c.h.b16 %v1220
          %v1263 = vunpack.c.l.b16 %v1221
          %v1264 = vunpack.c.h.b16 %v1221
          %v1265 = vunpack.c.l.b16 %v1222
          %v1266 = vunpack.c.h.b16 %v1222
          %v1267 = vunpack.c.l.b16 %v1223
          %v1268 = vunpack.c.h.b16 %v1223
          %v1269 = vunpack.c.l.b16 %v1224
          %v1270 = vunpack.c.h.b16 %v1224
          %v1271 = vunpack.c.l.b16 %v1225
          %v1272 = vunpack.c.h.b16 %v1225
          %v1273 = vunpack.c.l.b16 %v1226
          %v1274 = vunpack.c.h.b16 %v1226
          %v1275 = vpack.c.b16 %v1243, %v1243
          %v1276 = vpack.c.b16 %v1244, %v1244
          %v1277 = vpack.c.b16 %v1245, %v1245
          %v1278 = vpack.c.b16 %v1246, %v1246
          %v1279 = vpack.c.b16 %v1247, %v1247
          %v1280 = vpack.c.b16 %v1248, %v1248
          %v1281 = vpack.c.b16 %v1249, %v1249
          %v1282 = vpack.c.b16 %v1250, %v1250
          %v1283 = vpack.c.b16 %v1251, %v1251
          %v1284 = vpack.c.b16 %v1252, %v1252
          %v1285 = vpack.c.b16 %v1253, %v1253
          %v1286 = vpack.c.b16 %v1254, %v1254
          %v1287 = vpack.c.b16 %v1255, %v1255
          %v1288 = vpack.c.b16 %v1256, %v1256
          %v1289 = vpack.c.b16 %v1257, %v1257
          %v1290 = vpack.c.b16 %v1258, %v1258
          %v1291 = vpack.c.b16 %v1259, %v1259
          %v1292 = vpack.c.b16 %v1260, %v1260
          %v1293 = vpack.c.b16 %v1261, %v1261
          %v1294 = vpack.c.b16 %v1262, %v1262
          %v1295 = vpack.c.b16 %v1263, %v1263
          %v1296 = vpack.c.b16 %v1264, %v1264
          %v1297 = vpack.c.b16 %v1265, %v1265
          %v1298 = vpack.c.b16 %v1266, %v1266
          %v1299 = vpack.c.b16 %v1267, %v1267
          %v1300 = vpack.c.b16 %v1268, %v1268
          %v1301 = vpack.c.b16 %v1269, %v1269
          %v1302 = vpack.c.b16 %v1270, %v1270
          %v1303 = vpack.c.b16 %v1271, %v1271
          %v1304 = vpack.c.b16 %v1272, %v1272
          %v1305 = vpack.c.b16 %v1273, %v1273
          %v1306 = vpack.c.b16 %v1274, %v1274
          %1339 = vst [vmem:[%s329] sm:$0xf] %v1275
          %1340 = vst [vmem:[%s329 + $0x4] sm:$0xf] %v1276
          %1341 = vst [vmem:[%s329 + $0x8] sm:$0xf] %v1277
          %1342 = vst [vmem:[%s329 + $0xc] sm:$0xf] %v1278
          %1343 = vst [vmem:[%s329 + $0x10] sm:$0xf] %v1279
          %1344 = vst [vmem:[%s329 + $0x14] sm:$0xf] %v1280
          %1345 = vst [vmem:[%s329 + $0x18] sm:$0xf] %v1281
          %1346 = vst [vmem:[%s329 + $0x1c] sm:$0xf] %v1282
          %1347 = vst [vmem:[%s329 + $0x20] sm:$0xf] %v1283
          %1348 = vst [vmem:[%s329 + $0x24] sm:$0xf] %v1284
          %1349 = vst [vmem:[%s329 + $0x28] sm:$0xf] %v1285
          %1350 = vst [vmem:[%s329 + $0x2c] sm:$0xf] %v1286
          %1351 = vst [vmem:[%s329 + $0x30] sm:$0xf] %v1287
          %1352 = vst [vmem:[%s329 + $0x34] sm:$0xf] %v1288
          %1353 = vst [vmem:[%s329 + $0x38] sm:$0xf] %v1289
          %1354 = vst [vmem:[%s329 + $0x3c] sm:$0xf] %v1290
          %1355 = vst [vmem:[%s329 + $0x40] sm:$0xf] %v1291
          %1356 = vst [vmem:[%s329 + $0x44] sm:$0xf] %v1292
          %1357 = vst [vmem:[%s329 + $0x48] sm:$0xf] %v1293
          %1358 = vst [vmem:[%s329 + $0x4c] sm:$0xf] %v1294
          %1359 = vst [vmem:[%s329 + $0x50] sm:$0xf] %v1295
          %1360 = vst [vmem:[%s329 + $0x54] sm:$0xf] %v1296
          %1361 = vst [vmem:[%s329 + $0x58] sm:$0xf] %v1297
          %1362 = vst [vmem:[%s329 + $0x5c] sm:$0xf] %v1298
          %1363 = vst [vmem:[%s329 + $0x60] sm:$0xf] %v1299
          %1364 = vst [vmem:[%s329 + $0x64] sm:$0xf] %v1300
          %1365 = vst [vmem:[%s329 + $0x68] sm:$0xf] %v1301
          %1366 = vst [vmem:[%s329 + $0x6c] sm:$0xf] %v1302
          %1367 = vst [vmem:[%s329 + $0x70] sm:$0xf] %v1303
          %1368 = vst [vmem:[%s329 + $0x74] sm:$0xf] %v1304
          %1369 = vst [vmem:[%s329 + $0x78] sm:$0xf] %v1305
          %1370 = vst [vmem:[%s329 + $0x7c] sm:$0xf] %v1306
        $region60: #{tpu_custom_call.1} parent=39 // pred_fallthru
          _
        %s1371 = sand.u32 %s181, 1
        %s1372 = scalar_lea.sflag [#allocation5], %s1371
        %s1373 = sand.u32 %s181, 1
        %s1374 = smul.addr %s1373, 128
        %s1375 = scalar_lea.vmem [#allocation9], %s1374
        // Predicated region
        $region61: #{tpu_custom_call.1} parent=39 // pred_check
          %p1376 = pneg %p191
        $region62: #{tpu_custom_call.1} parent=39 // pred_check_branch
          %1378 = sbr.rel (%p1376) target = $region64
        $region63: #{tpu_custom_call.1} parent=39 // pred_region
          %s1379 = smul.u32 32, %s29
          %s1381 = ssub.s32 2048, 2048
          %1382 = vsyncadd %s1372, %s1381
          %s1383 = smul.addr %s28, 32
          %s1384 = sadd.s32 %s1379, %s1383
          %s1385 = smul.addr %s1384, 64
          %s1386 = scalar_lea.hbm %s5, %s1385
          %s1387 = sshll.u32 %s1375, 4
          %s1388 = int_to_ptr.vmem [resolvable:$true] %s1387
          %1393 = dma.vmem_to_hbm [thread:$0]  %s1388, 2048, %s1386, %s1372, 64, 64, 4
        $region64: #{tpu_custom_call.1} parent=39 // pred_fallthru
          _
      $region40: #{tpu_custom_call.1} parent=5 // pred_fallthru
        _
      %p1394 = scmp.le.s32.totalorder 2, %s18
      // Predicated region
      $region65: #{tpu_custom_call.1} parent=5 // pred_check
        %p1395 = pneg %p1394
      $region66: #{tpu_custom_call.1} parent=5 // pred_check_branch
        %1397 = sbr.rel (%p1395) target = $region68
      $region67: #{tpu_custom_call.1} parent=5 // pred_region
        %s1398 = ssub.s32 %s18, 2
        // Predicated region
        $region69: #{tpu_custom_call.1} parent=67 // pred_check
          %p1399 = pneg %p197
        $region70: #{tpu_custom_call.1} parent=67 // pred_check_branch
          %1401 = sbr.rel (%p1399) target = $region72
        $region71: #{tpu_custom_call.1} parent=67 // pred_region
          %s1402 = sand.u32 %s182, 1
          %s1403 = scalar_lea.sflag [#allocation5], %s1402
          %s1404 = sand.u32 %s182, 1
          %s1405 = smul.addr %s1404, 128
          %s1406 = scalar_lea.vmem [#allocation9], %s1405
          %1407 = dma.done %s1403, 2048
        $region72: #{tpu_custom_call.1} parent=67 // pred_fallthru
          _
      $region68: #{tpu_custom_call.1} parent=5 // pred_fallthru
        _
    $region6: #{tpu_custom_call.1} parent=1 // loop_footer
      %s22 = sadd.s32 1, %s18
    $region7: #{tpu_custom_call.1} parent=1 // loop_footer_branch
      %17 = sbr.rel target = $region3
    $region8: #{tpu_custom_call.1} parent=1 // loop_exit
      _
    %1408 = vsyncpa [#allocation4], 1
    %s1409 = scalar_lea.sflag [#allocation4], 1
    %1410 = vsyncpa %s1409, 1
    %1411 = vsyncpa [#allocation7], 1
    %1412 = vsyncpa [#allocation5], 1
    %s1413 = scalar_lea.sflag [#allocation5], 1
    %1414 = vsyncpa %s1413, 1

</llo_original>
